<compile_context>
chip_gen: v7x
topology: tpu7x:2x2x1
jax: 0.10.0
libtpu: 0.0.40
codegen_flags: <defaults>
</compile_context>

<pallas_src>
import math
import jax
import jax.numpy as jnp
from jax import lax
from jax.experimental import pallas as pl
from jax.experimental.pallas import tpu as pltpu


def _tpu_core_and_vmem():
    """(#TensorCores sharing the grid, per-core VMEM bytes), with conservative fallbacks."""
    kind = ""
    try:
        kind = jax.devices()[0].device_kind.lower()
    except Exception:
        pass
    n_tc = 2 if ("v7" in kind or "v4" in kind) else 1   # v7x: 2 TC/chip; v4: megacore
    vmem = 0
    try:
        info = pltpu.get_tpu_info()
        vmem = int(getattr(info, "vmem_capacity_bytes", 0) or 0)
    except Exception:
        vmem = 0
    if vmem <= 0:
        vmem = (64 << 20) if "v7" in kind else (128 << 20)
    return n_tc, vmem


def make_attention_layer(d_model, n_heads, d_keys=None, d_values=None,
                         matmul_dtype=jnp.float32, approx_reciprocal=False):
    d_keys = d_keys or d_model // n_heads
    d_values = d_values or d_model // n_heads
    H, dk, dv = n_heads, d_keys, d_values
    scale = 1.0 / math.sqrt(d_keys)
    mmd = matmul_dtype

    def apply(queries, keys, values, params, attn_mask=None):
        # TODO(synk): attn_mask ignored (FullAttention with mask_flag=False -> no-op).
        del attn_mask
        wq, bq, wk, bk, wv, bv, wo, bo = params
        B, L, _ = queries.shape
        _, S, _ = keys.shape

        # Host-side, one-time weight relayout: heads become the leading dim so the
        # BlockSpec selects the per-head slice during the HBM->VMEM DMA (in a real model
        # the weights would simply be stored head-major).
        wq3 = wq.reshape(d_model, H, dk).transpose(1, 0, 2)   # (H, d_model, dk)
        wk3 = wk.reshape(d_model, H, dk).transpose(1, 0, 2)
        wv3 = wv.reshape(d_model, H, dv).transpose(1, 0, 2)   # (H, d_model, dv)
        wo3 = wo.reshape(H, dv, d_model)                      # (H, dv, d_model)
        bq3 = bq.reshape(H, 1, dk)
        bk3 = bk.reshape(H, 1, dk)
        bv3 = bv.reshape(H, 1, dv)

        n_tc, vmem_cap = _tpu_core_and_vmem()

        def vmem_bytes_per_step(bt):
            # Pipeline blocks (double-buffered) + single-copy in-kernel intermediates.
            blocks = (2 * bt * L * d_model + 2 * bt * S * d_model   # q + out, k, v
                      + bt * L * S                                  # attn (one head)
                      + 3 * d_model * max(dk, dv) + dv * d_model    # weight slices
                      + 2 * dk + dv + d_model)                      # biases
            inter = (bt * (L + 2 * S) * d_model                     # q2/k2/v2 copies
                     + bt * (L * dk + S * dk + S * dv)              # Qh/Kh/Vh
                     + 3 * bt * L * S                               # scores / exp / A
                     + 2 * bt * L * dv                              # O (+ reshape copy)
                     + 2 * bt * L * d_model)                        # contribution + acc
            return 4 * (2 * blocks + inter)

        budget = int(0.6 * vmem_cap)
        # v5e/v6e (1 TC): allow Bt = B.  v7x/v4 (2 TCs): keep >= n_tc batch-grid steps so
        # dimension_semantics=("parallel", ...) can shard the batch axis across cores.
        cap_bt = B if n_tc == 1 else max(1, B // n_tc)
        Bt = 1
        for cand in range(cap_bt, 0, -1):
            if B % cand == 0 and vmem_bytes_per_step(cand) <= budget:
                Bt = cand
                break
        vmem_limit = int(min(0.75 * vmem_cap,
                             max(2 * vmem_bytes_per_step(Bt), 32 << 20)))

        def mm(a, b, dims=None):
            # Optionally bf16 MXU operands; accumulation / results stay f32.
            a = a.astype(mmd)
            b = b.astype(mmd)
            if dims is None:
                return jnp.dot(a, b, preferred_element_type=jnp.float32)
            return lax.dot_general(a, b, dims, preferred_element_type=jnp.float32)

        def kernel(q_ref, k_ref, v_ref,
                   wq_ref, bq_ref, wk_ref, bk_ref, wv_ref, bv_ref, wo_ref, bo_ref,
                   out_ref, attn_ref):
            h = pl.program_id(1)

            q2 = q_ref[...].reshape(Bt * L, d_model)
            k2 = k_ref[...].reshape(Bt * S, d_model)
            v2 = v_ref[...].reshape(Bt * S, d_model)

            # Per-head projections (weight slice chosen by the BlockSpec).  Heads never
            # live on the lane axis of activations, so no cross-lane deinterleave exists.
            # Softmax scale folded into Q once.
            Qh = (mm(q2, wq_ref[0]) + bq_ref[0]) * scale          # (Bt*L, dk) f32
            Kh = mm(k2, wk_ref[0]) + bk_ref[0]                    # (Bt*S, dk) f32
            Vh = mm(v2, wv_ref[0]) + bv_ref[0]                    # (Bt*S, dv) f32

            Q3 = Qh.reshape(Bt, L, dk)
            K3 = Kh.reshape(Bt, S, dk)
            V3 = Vh.reshape(Bt, S, dv)

            # Batched QK^T over the batch tile (no explicit transpose of K), f32 softmax.
            scores = mm(Q3, K3, (((2,), (2,)), ((0,), (0,))))     # (Bt, L, S)
            m = jnp.max(scores, axis=-1, keepdims=True)
            e = jnp.exp(scores - m)
            denom = jnp.sum(e, axis=-1, keepdims=True)
            A = e * pl.reciprocal(denom, approx=approx_reciprocal)

            # Attention weights written directly in torch "bhls" order (no wrapper
            # transpose, no extra HBM round trip).
            attn_ref[...] = A.reshape(Bt, 1, L, S)

            O = mm(A, V3, (((2,), (1,)), ((0,), (0,))))           # (Bt, L, dv)

            # Per-head slice of the out-projection, accumulated across the head axis.
            contrib = mm(O.reshape(Bt * L, dv), wo_ref[0]).reshape(Bt, L, d_model)

            @pl.when(h == 0)
            def _init():
                out_ref[...] = jnp.broadcast_to(
                    bo_ref[...].reshape(1, 1, d_model), (Bt, L, d_model))

            out_ref[...] += contrib

        out, attn = pl.pallas_call(
            kernel,
            out_shape=(
                jax.ShapeDtypeStruct((B, L, d_model), jnp.float32),
                jax.ShapeDtypeStruct((B, H, L, S), jnp.float32),
            ),
            grid=(B // Bt, H),
            in_specs=[
                pl.BlockSpec((Bt, L, d_model), lambda b, h: (b, 0, 0)),
                pl.BlockSpec((Bt, S, d_model), lambda b, h: (b, 0, 0)),
                pl.BlockSpec((Bt, S, d_model), lambda b, h: (b, 0, 0)),
                pl.BlockSpec((1, d_model, dk), lambda b, h: (h, 0, 0)),
                pl.BlockSpec((1, 1, dk), lambda b, h: (h, 0, 0)),
                pl.BlockSpec((1, d_model, dk), lambda b, h: (h, 0, 0)),
                pl.BlockSpec((1, 1, dk), lambda b, h: (h, 0, 0)),
                pl.BlockSpec((1, d_model, dv), lambda b, h: (h, 0, 0)),
                pl.BlockSpec((1, 1, dv), lambda b, h: (h, 0, 0)),
                pl.BlockSpec((1, dv, d_model), lambda b, h: (h, 0, 0)),
                pl.BlockSpec((1, d_model), lambda b, h: (0, 0)),
            ],
            out_specs=(
                pl.BlockSpec((Bt, L, d_model), lambda b, h: (b, 0, 0)),
                pl.BlockSpec((Bt, 1, L, S), lambda b, h: (b, h, 0, 0)),
            ),
            compiler_params=pltpu.CompilerParams(
                dimension_semantics=("parallel", "arbitrary"),
                vmem_limit_bytes=vmem_limit),
        )(queries, keys, values, wq3, bq3, wk3, bk3, wv3, bv3, wo3, bo)
        return out, attn

    return apply


def reference_attention_layer(q, k, v, params, n_heads, d_keys, d_values):
    """Pure-JAX reference mirroring the PyTorch module (FullAttention inner)."""
    wq, bq, wk, bk, wv, bv, wo, bo = params
    B, L, _ = q.shape
    _, S, _ = k.shape
    H = n_heads
    Q = (q @ wq + bq).reshape(B, L, H, d_keys)
    K = (k @ wk + bk).reshape(B, S, H, d_keys)
    V = (v @ wv + bv).reshape(B, S, H, d_values)
    scale = 1.0 / math.sqrt(d_keys)
    scores = jnp.einsum("blhe,bshe->bhls", Q, K) * scale
    A = jax.nn.softmax(scores, axis=-1)
    O = jnp.einsum("bhls,bshd->blhd", A, V).reshape(B, L, H * d_values)
    return O @ wo + bo, A


if __name__ == "__main__":
    B, L, S = 8, 8, 8
    d_model, n_heads = 32, 4
    d_keys = d_model // n_heads
    d_values = d_model // n_heads

    key = jax.random.PRNGKey(0)
    ks = jax.random.split(key, 12)
    init = lambda k, shape, s=0.1: (s * jax.random.normal(k, shape)).astype(jnp.float32)

    # Deterministic synthetic parameters (shapes from nn.Linear defs in __init__).
    wq = init(ks[0], (d_model, d_keys * n_heads))
    bq = init(ks[1], (1, d_keys * n_heads))
    wk = init(ks[2], (d_model, d_keys * n_heads))
    bk = init(ks[3], (1, d_keys * n_heads))
    wv = init(ks[4], (d_model, d_values * n_heads))
    bv = init(ks[5], (1, d_values * n_heads))
    wo = init(ks[6], (d_values * n_heads, d_model))
    bo = init(ks[7], (1, d_model))
    params = (wq, bq, wk, bk, wv, bv, wo, bo)

    queries = init(ks[8], (B, L, d_model), s=1.0)
    keys_in = init(ks[9], (B, S, d_model), s=1.0)
    values_in = init(ks[10], (B, S, d_model), s=1.0)
    # attn_mask: FullAttention used without masking (mask_flag=False) -> ignored.

    out_ref_, attn_ref_ = reference_attention_layer(
        queries, keys_in, values_in, params, n_heads, d_keys, d_values)

    # Strict path: f32 MXU operands, exact reciprocal.
    layer_f32 = make_attention_layer(d_model, n_heads, d_keys, d_values)
    out, attn = layer_f32(queries, keys_in, values_in, params)
    out = jax.block_until_ready(out)
    attn = jax.block_until_ready(attn)
    assert out.shape == (B, L, d_model) and attn.shape == (B, n_heads, L, S)
    assert jnp.allclose(out, out_ref_, atol=2e-5, rtol=2e-5)
    assert jnp.allclose(attn, attn_ref_, atol=2e-5, rtol=2e-5)

    # Throughput path: bf16 MXU operands (f32 accumulation) + EUP approx reciprocal, as
    # recommended for v6e/v7x; tolerance relaxed for operand rounding.
    layer_bf16 = make_attention_layer(d_model, n_heads, d_keys, d_values,
                                      matmul_dtype=jnp.bfloat16,
                                      approx_reciprocal=True)
    out16, attn16 = layer_bf16(queries, keys_in, values_in, params)
    out16 = jax.block_until_ready(out16)
    attn16 = jax.block_until_ready(attn16)
    assert out16.shape == (B, L, d_model) and attn16.shape == (B, n_heads, L, S)
    assert jnp.allclose(out16, out_ref_, atol=5e-2, rtol=5e-2)
    assert jnp.allclose(attn16, attn_ref_, atol=5e-2, rtol=5e-2)

    print("KERNEL_OK")
</pallas_src>

<mosaic_0001>
module attributes {stable_mosaic.version = 11 : i64} {
  func.func @kernel(%arg0: i32, %arg1: i32, %arg2: memref<8x8x32xf32, #tpu.memory_space<vmem>>, %arg3: memref<8x8x32xf32, #tpu.memory_space<vmem>>, %arg4: memref<8x8x32xf32, #tpu.memory_space<vmem>>, %arg5: memref<1x32x8xf32, #tpu.memory_space<vmem>>, %arg6: memref<1x1x8xf32, #tpu.memory_space<vmem>>, %arg7: memref<1x32x8xf32, #tpu.memory_space<vmem>>, %arg8: memref<1x1x8xf32, #tpu.memory_space<vmem>>, %arg9: memref<1x32x8xf32, #tpu.memory_space<vmem>>, %arg10: memref<1x1x8xf32, #tpu.memory_space<vmem>>, %arg11: memref<1x8x32xf32, #tpu.memory_space<vmem>>, %arg12: memref<1x32xf32, #tpu.memory_space<vmem>>, %arg13: memref<8x8x32xf32, #tpu.memory_space<vmem>>, %arg14: memref<8x1x8x8xf32, #tpu.memory_space<vmem>>) attributes {dimension_semantics = [#tpu.dimension_semantics<parallel>, #tpu.dimension_semantics<arbitrary>], iteration_bounds = array<i64: 1, 4>, scalar_prefetch = 0 : i64, scratch_operands = 0 : i64, tpu.core_type = #tpu.core_type<tc>, window_params = [{transform_indices = @transform_0, window_bounds = array<i64: 8, 8, 32>}, {transform_indices = @transform_1, window_bounds = array<i64: 8, 8, 32>}, {transform_indices = @transform_2, window_bounds = array<i64: 8, 8, 32>}, {transform_indices = @transform_3, window_bounds = array<i64: 1, 32, 8>}, {transform_indices = @transform_4, window_bounds = array<i64: 1, 1, 8>}, {transform_indices = @transform_5, window_bounds = array<i64: 1, 32, 8>}, {transform_indices = @transform_6, window_bounds = array<i64: 1, 1, 8>}, {transform_indices = @transform_7, window_bounds = array<i64: 1, 32, 8>}, {transform_indices = @transform_8, window_bounds = array<i64: 1, 1, 8>}, {transform_indices = @transform_9, window_bounds = array<i64: 1, 8, 32>}, {pipeline_mode = #tpu.pipeline_mode<synchronous>, transform_indices = @transform_10, window_bounds = array<i64: 1, 32>}, {transform_indices = @transform_11, window_bounds = array<i64: 8, 8, 32>}, {transform_indices = @transform_12, window_bounds = array<i64: 8, 1, 8, 8>}]} {
    %c0 = arith.constant 0 : index
    %c0_0 = arith.constant 0 : index
    %c0_1 = arith.constant 0 : index
    %0 = vector.load %arg2[%c0, %c0_0, %c0_1] : memref<8x8x32xf32, #tpu.memory_space<vmem>>, vector<8x8x32xf32>
    %1 = vector.shape_cast %0 : vector<8x8x32xf32> to vector<64x32xf32>
    %c0_2 = arith.constant 0 : index
    %c0_3 = arith.constant 0 : index
    %c0_4 = arith.constant 0 : index
    %2 = vector.load %arg3[%c0_2, %c0_3, %c0_4] : memref<8x8x32xf32, #tpu.memory_space<vmem>>, vector<8x8x32xf32>
    %3 = vector.shape_cast %2 : vector<8x8x32xf32> to vector<64x32xf32>
    %c0_5 = arith.constant 0 : index
    %c0_6 = arith.constant 0 : index
    %c0_7 = arith.constant 0 : index
    %4 = vector.load %arg4[%c0_5, %c0_6, %c0_7] : memref<8x8x32xf32, #tpu.memory_space<vmem>>, vector<8x8x32xf32>
    %5 = vector.shape_cast %4 : vector<8x8x32xf32> to vector<64x32xf32>
    %c0_8 = arith.constant 0 : index
    %c0_9 = arith.constant 0 : index
    %c0_10 = arith.constant 0 : index
    %6 = vector.load %arg5[%c0_8, %c0_9, %c0_10] : memref<1x32x8xf32, #tpu.memory_space<vmem>>, vector<1x32x8xf32>
    %7 = vector.shape_cast %6 : vector<1x32x8xf32> to vector<32x8xf32>
    %cst = arith.constant dense<0.000000e+00> : vector<64x8xf32>
    %8 = tpu.matmul %1, %7, %cst {dimension_numbers = #tpu.dot_dimension_numbers<[1], [0], [0], [1], [0, 0, 1, 1], [], []>} : vector<64x32xf32>, vector<32x8xf32>, vector<64x8xf32> -> vector<64x8xf32>
    %c0_11 = arith.constant 0 : index
    %c0_12 = arith.constant 0 : index
    %c0_13 = arith.constant 0 : index
    %9 = vector.load %arg6[%c0_11, %c0_12, %c0_13] : memref<1x1x8xf32, #tpu.memory_space<vmem>>, vector<1x1x8xf32>
    %10 = vector.shape_cast %9 : vector<1x1x8xf32> to vector<1x8xf32>
    %11 = vector.broadcast %10 : vector<1x8xf32> to vector<64x8xf32>
    %12 = arith.addf %8, %11 : vector<64x8xf32>
    %cst_14 = arith.constant 0.353553385 : f32
    %13 = vector.broadcast %cst_14 : f32 to vector<64x8xf32>
    %14 = arith.mulf %12, %13 : vector<64x8xf32>
    %c0_15 = arith.constant 0 : index
    %c0_16 = arith.constant 0 : index
    %c0_17 = arith.constant 0 : index
    %15 = vector.load %arg7[%c0_15, %c0_16, %c0_17] : memref<1x32x8xf32, #tpu.memory_space<vmem>>, vector<1x32x8xf32>
    %16 = vector.shape_cast %15 : vector<1x32x8xf32> to vector<32x8xf32>
    %cst_18 = arith.constant dense<0.000000e+00> : vector<64x8xf32>
    %17 = tpu.matmul %3, %16, %cst_18 {dimension_numbers = #tpu.dot_dimension_numbers<[1], [0], [0], [1], [0, 0, 1, 1], [], []>} : vector<64x32xf32>, vector<32x8xf32>, vector<64x8xf32> -> vector<64x8xf32>
    %c0_19 = arith.constant 0 : index
    %c0_20 = arith.constant 0 : index
    %c0_21 = arith.constant 0 : index
    %18 = vector.load %arg8[%c0_19, %c0_20, %c0_21] : memref<1x1x8xf32, #tpu.memory_space<vmem>>, vector<1x1x8xf32>
    %19 = vector.shape_cast %18 : vector<1x1x8xf32> to vector<1x8xf32>
    %20 = vector.broadcast %19 : vector<1x8xf32> to vector<64x8xf32>
    %21 = arith.addf %17, %20 : vector<64x8xf32>
    %c0_22 = arith.constant 0 : index
    %c0_23 = arith.constant 0 : index
    %c0_24 = arith.constant 0 : index
    %22 = vector.load %arg9[%c0_22, %c0_23, %c0_24] : memref<1x32x8xf32, #tpu.memory_space<vmem>>, vector<1x32x8xf32>
    %23 = vector.shape_cast %22 : vector<1x32x8xf32> to vector<32x8xf32>
    %cst_25 = arith.constant dense<0.000000e+00> : vector<64x8xf32>
    %24 = tpu.matmul %5, %23, %cst_25 {dimension_numbers = #tpu.dot_dimension_numbers<[1], [0], [0], [1], [0, 0, 1, 1], [], []>} : vector<64x32xf32>, vector<32x8xf32>, vector<64x8xf32> -> vector<64x8xf32>
    %c0_26 = arith.constant 0 : index
    %c0_27 = arith.constant 0 : index
    %c0_28 = arith.constant 0 : index
    %25 = vector.load %arg10[%c0_26, %c0_27, %c0_28] : memref<1x1x8xf32, #tpu.memory_space<vmem>>, vector<1x1x8xf32>
    %26 = vector.shape_cast %25 : vector<1x1x8xf32> to vector<1x8xf32>
    %27 = vector.broadcast %26 : vector<1x8xf32> to vector<64x8xf32>
    %28 = arith.addf %24, %27 : vector<64x8xf32>
    %29 = vector.shape_cast %14 : vector<64x8xf32> to vector<8x8x8xf32>
    %30 = vector.shape_cast %21 : vector<64x8xf32> to vector<8x8x8xf32>
    %31 = vector.shape_cast %28 : vector<64x8xf32> to vector<8x8x8xf32>
    %cst_29 = arith.constant dense<0.000000e+00> : vector<8x8x8xf32>
    %32 = tpu.matmul %29, %30, %cst_29 {dimension_numbers = #tpu.dot_dimension_numbers<[2], [2], [1], [1], [0, 0, 0, 1, 1, 1], [0], [0]>} : vector<8x8x8xf32>, vector<8x8x8xf32>, vector<8x8x8xf32> -> vector<8x8x8xf32>
    %cst_30 = arith.constant dense<0xFF800000> : vector<8x8xf32>
    %33 = vector.multi_reduction <maximumf>, %32, %cst_30 [2] : vector<8x8x8xf32> to vector<8x8xf32>
    %34 = vector.shape_cast %33 : vector<8x8xf32> to vector<8x8x1xf32>
    %35 = vector.broadcast %34 : vector<8x8x1xf32> to vector<8x8x8xf32>
    %36 = arith.subf %32, %35 : vector<8x8x8xf32>
    %37 = math.exp %36 : vector<8x8x8xf32>
    %cst_31 = arith.constant dense<0.000000e+00> : vector<8x8xf32>
    %38 = vector.multi_reduction <add>, %37, %cst_31 [2] : vector<8x8x8xf32> to vector<8x8xf32>
    %39 = vector.shape_cast %38 : vector<8x8xf32> to vector<8x8x1xf32>
    %40 = tpu.reciprocal %39 : vector<8x8x1xf32> -> vector<8x8x1xf32>
    %41 = vector.broadcast %40 : vector<8x8x1xf32> to vector<8x8x8xf32>
    %42 = arith.mulf %37, %41 : vector<8x8x8xf32>
    %43 = vector.shape_cast %42 : vector<8x8x8xf32> to vector<8x1x8x8xf32>
    %c0_32 = arith.constant 0 : index
    %c0_33 = arith.constant 0 : index
    %c0_34 = arith.constant 0 : index
    %c0_35 = arith.constant 0 : index
    %44 = vector.load %arg14[%c0_32, %c0_33, %c0_34, %c0_35] : memref<8x1x8x8xf32, #tpu.memory_space<vmem>>, vector<8x1x8x8xf32>
    tpu.vector_store %arg14[%c0_32, %c0_33, %c0_34, %c0_35], %43 {strides = array<i32>} : memref<8x1x8x8xf32, #tpu.memory_space<vmem>>, vector<8x1x8x8xf32>,
    %cst_36 = arith.constant dense<0.000000e+00> : vector<8x8x8xf32>
    %45 = tpu.matmul %42, %31, %cst_36 {dimension_numbers = #tpu.dot_dimension_numbers<[2], [1], [1], [2], [0, 0, 0, 1, 1, 2], [0], [0]>} : vector<8x8x8xf32>, vector<8x8x8xf32>, vector<8x8x8xf32> -> vector<8x8x8xf32>
    %46 = vector.shape_cast %45 : vector<8x8x8xf32> to vector<64x8xf32>
    %c0_37 = arith.constant 0 : index
    %c0_38 = arith.constant 0 : index
    %c0_39 = arith.constant 0 : index
    %47 = vector.load %arg11[%c0_37, %c0_38, %c0_39] : memref<1x8x32xf32, #tpu.memory_space<vmem>>, vector<1x8x32xf32>
    %48 = vector.shape_cast %47 : vector<1x8x32xf32> to vector<8x32xf32>
    %cst_40 = arith.constant dense<0.000000e+00> : vector<64x32xf32>
    %49 = tpu.matmul %46, %48, %cst_40 {dimension_numbers = #tpu.dot_dimension_numbers<[1], [0], [0], [1], [0, 0, 1, 1], [], []>} : vector<64x8xf32>, vector<8x32xf32>, vector<64x32xf32> -> vector<64x32xf32>
    %50 = vector.shape_cast %49 : vector<64x32xf32> to vector<8x8x32xf32>
    %c0_i32 = arith.constant 0 : i32
    %51 = arith.cmpi eq, %arg1, %c0_i32 : i32
    %52 = arith.extui %51 : i1 to i32
    %c0_i32_41 = arith.constant 0 : i32
    %53 = arith.cmpi ne, %52, %c0_i32_41 : i32
    scf.if %53 {
      %c0_48 = arith.constant 0 : index
      %c0_49 = arith.constant 0 : index
      %57 = vector.load %arg12[%c0_48, %c0_49] : memref<1x32xf32, #tpu.memory_space<vmem>>, vector<1x32xf32>
      %58 = vector.shape_cast %57 : vector<1x32xf32> to vector<1x1x32xf32>
      %59 = vector.shape_cast %58 : vector<1x1x32xf32> to vector<1x1x32xf32>
      %60 = vector.broadcast %59 : vector<1x1x32xf32> to vector<8x8x32xf32>
      %c0_50 = arith.constant 0 : index
      %c0_51 = arith.constant 0 : index
      %c0_52 = arith.constant 0 : index
      %61 = vector.load %arg13[%c0_50, %c0_51, %c0_52] : memref<8x8x32xf32, #tpu.memory_space<vmem>>, vector<8x8x32xf32>
      tpu.vector_store %arg13[%c0_50, %c0_51, %c0_52], %60 {strides = array<i32>} : memref<8x8x32xf32, #tpu.memory_space<vmem>>, vector<8x8x32xf32>,
    } else {
    }
    %c0_42 = arith.constant 0 : index
    %c0_43 = arith.constant 0 : index
    %c0_44 = arith.constant 0 : index
    %54 = vector.load %arg13[%c0_42, %c0_43, %c0_44] : memref<8x8x32xf32, #tpu.memory_space<vmem>>, vector<8x8x32xf32>
    %55 = arith.addf %54, %50 : vector<8x8x32xf32>
    %c0_45 = arith.constant 0 : index
    %c0_46 = arith.constant 0 : index
    %c0_47 = arith.constant 0 : index
    %56 = vector.load %arg13[%c0_45, %c0_46, %c0_47] : memref<8x8x32xf32, #tpu.memory_space<vmem>>, vector<8x8x32xf32>
    tpu.vector_store %arg13[%c0_45, %c0_46, %c0_47], %55 {strides = array<i32>} : memref<8x8x32xf32, #tpu.memory_space<vmem>>, vector<8x8x32xf32>,
    return
  }
  func.func @transform_0(%arg0: i32, %arg1: i32) -> (i32, i32, i32) {
    %c0_i32 = arith.constant 0 : i32
    %c0_i32_0 = arith.constant 0 : i32
    %c0_i32_1 = arith.constant 0 : i32
    return %arg0, %c0_i32, %c0_i32_0 : i32, i32, i32
  }
  func.func @transform_1(%arg0: i32, %arg1: i32) -> (i32, i32, i32) {
    %c0_i32 = arith.constant 0 : i32
    %c0_i32_0 = arith.constant 0 : i32
    %c0_i32_1 = arith.constant 0 : i32
    return %arg0, %c0_i32, %c0_i32_0 : i32, i32, i32
  }
  func.func @transform_2(%arg0: i32, %arg1: i32) -> (i32, i32, i32) {
    %c0_i32 = arith.constant 0 : i32
    %c0_i32_0 = arith.constant 0 : i32
    %c0_i32_1 = arith.constant 0 : i32
    return %arg0, %c0_i32, %c0_i32_0 : i32, i32, i32
  }
  func.func @transform_3(%arg0: i32, %arg1: i32) -> (i32, i32, i32) {
    %c0_i32 = arith.constant 0 : i32
    %c0_i32_0 = arith.constant 0 : i32
    %c0_i32_1 = arith.constant 0 : i32
    return %arg1, %c0_i32, %c0_i32_0 : i32, i32, i32
  }
  func.func @transform_4(%arg0: i32, %arg1: i32) -> (i32, i32, i32) {
    %c0_i32 = arith.constant 0 : i32
    %c0_i32_0 = arith.constant 0 : i32
    %c0_i32_1 = arith.constant 0 : i32
    return %arg1, %c0_i32, %c0_i32_0 : i32, i32, i32
  }
  func.func @transform_5(%arg0: i32, %arg1: i32) -> (i32, i32, i32) {
    %c0_i32 = arith.constant 0 : i32
    %c0_i32_0 = arith.constant 0 : i32
    %c0_i32_1 = arith.constant 0 : i32
    return %arg1, %c0_i32, %c0_i32_0 : i32, i32, i32
  }
  func.func @transform_6(%arg0: i32, %arg1: i32) -> (i32, i32, i32) {
    %c0_i32 = arith.constant 0 : i32
    %c0_i32_0 = arith.constant 0 : i32
    %c0_i32_1 = arith.constant 0 : i32
    return %arg1, %c0_i32, %c0_i32_0 : i32, i32, i32
  }
  func.func @transform_7(%arg0: i32, %arg1: i32) -> (i32, i32, i32) {
    %c0_i32 = arith.constant 0 : i32
    %c0_i32_0 = arith.constant 0 : i32
    %c0_i32_1 = arith.constant 0 : i32
    return %arg1, %c0_i32, %c0_i32_0 : i32, i32, i32
  }
  func.func @transform_8(%arg0: i32, %arg1: i32) -> (i32, i32, i32) {
    %c0_i32 = arith.constant 0 : i32
    %c0_i32_0 = arith.constant 0 : i32
    %c0_i32_1 = arith.constant 0 : i32
    return %arg1, %c0_i32, %c0_i32_0 : i32, i32, i32
  }
  func.func @transform_9(%arg0: i32, %arg1: i32) -> (i32, i32, i32) {
    %c0_i32 = arith.constant 0 : i32
    %c0_i32_0 = arith.constant 0 : i32
    %c0_i32_1 = arith.constant 0 : i32
    return %arg1, %c0_i32, %c0_i32_0 : i32, i32, i32
  }
  func.func @transform_10(%arg0: i32, %arg1: i32) -> (i32, i32) {
    %c0_i32 = arith.constant 0 : i32
    %c0_i32_0 = arith.constant 0 : i32
    %c0_i32_1 = arith.constant 0 : i32
    return %c0_i32, %c0_i32_0 : i32, i32
  }
  func.func @transform_11(%arg0: i32, %arg1: i32) -> (i32, i32, i32) {
    %c0_i32 = arith.constant 0 : i32
    %c0_i32_0 = arith.constant 0 : i32
    %c0_i32_1 = arith.constant 0 : i32
    return %arg0, %c0_i32, %c0_i32_0 : i32, i32, i32
  }
  func.func @transform_12(%arg0: i32, %arg1: i32) -> (i32, i32, i32, i32) {
    %c0_i32 = arith.constant 0 : i32
    %c0_i32_0 = arith.constant 0 : i32
    %c0_i32_1 = arith.constant 0 : i32
    return %arg0, %arg1, %c0_i32, %c0_i32_0 : i32, i32, i32, i32
  }
}

</mosaic_0001>

<llo_original>
// kernel: tpu_custom_call.1
$region0: #{tpu_custom_call.1}
  #allocation0 [shape = 'u32[]', space=smem, size = 0x4, offset = 0x4, fixed_abs, tag = 'smem constant byte address 0x4 - core index']
  #allocation1 [shape = 'u32[144,128]{1,0:T(1,128)}', space=vmem, size = 0x12000, scoped, tag = 'internal scratch']
  %s0 = inlined_call_operand.vmem [shape: f32[8,8,32], index: 0, kind: input, shape index: {}]
  %s1 = inlined_call_operand.vmem [shape: f32[8,8,32], index: 1, kind: input, shape index: {}]
  %s2 = inlined_call_operand.vmem [shape: f32[8,8,32], index: 2, kind: input, shape index: {}]
  %s3 = inlined_call_operand.vmem [shape: f32[4,32,8], index: 3, kind: input, shape index: {}]
  %s4 = inlined_call_operand.vmem [shape: f32[4,1,8], index: 4, kind: input, shape index: {}]
  %s5 = inlined_call_operand.vmem [shape: f32[4,32,8], index: 5, kind: input, shape index: {}]
  %s6 = inlined_call_operand.vmem [shape: f32[4,1,8], index: 6, kind: input, shape index: {}]
  %s7 = inlined_call_operand.vmem [shape: f32[4,32,8], index: 7, kind: input, shape index: {}]
  %s8 = inlined_call_operand.vmem [shape: f32[4,1,8], index: 8, kind: input, shape index: {}]
  %s9 = inlined_call_operand.vmem [shape: f32[4,8,32], index: 9, kind: input, shape index: {}]
  %s10 = inlined_call_operand.vmem [shape: f32[1,32], index: 10, kind: input, shape index: {}]
  %s11 = inlined_call_operand.hbm [shape: f32[8,8,32], index: 11, kind: output, shape index: {0}]
  %s12 = inlined_call_operand.hbm [shape: f32[8,4,8,8], index: 12, kind: output, shape index: {1}]
  %13 = xla_tuple %s11, %s12
  %s14 = sld [smem:[#allocation0]]
  $region89: #{tpu_custom_call.1} parent=0
    _
  %s16 = ssub.s32 1, %s14
  %s17 = scalar_select 0, %s16, %s14
  $region1: #{tpu_custom_call.1} parent=0
    #allocation2 [shape = 'u8[32768]{0}', space=vmem, size = 0x8000, scoped, tag = 'output window, operand 0, single buffered']
    #allocation3 [shape = 's32[2]{0}', space=sflag, size = 0x8, scoped, tag = 'scoped memory for tpu_custom_call.1']
    #allocation4 [shape = 'u8[65536]{0}', space=vmem, size = 0x10000, scoped, tag = 'output window, operand 1']
    #allocation5 [shape = 's32[2]{0}', space=sflag, size = 0x8, scoped, tag = 'scoped memory for tpu_custom_call.1']
    %18 = vsyncpa [#allocation3], 0
    %19 = vsyncpa [#allocation5], 0
    %s20 = scalar_lea.sflag [#allocation5], 1
    %21 = vsyncpa %s20, 0
    loop: start=0, step=1, limit=6
    $region2: #{tpu_custom_call.1} parent=1 // loop_pre_header
      _
    $region3: #{tpu_custom_call.1} parent=1 // loop_header
      %s23 = sphi 0, %s27
      %p24 = scmp.ge.s32.totalorder %s23, 6
      %s30 = sphi 0, %s42
      %s31 = sphi 0, %s38
      %s32 = sphi 0, %s30
      %s33 = sphi 0, %s31
      %s34 = sphi 0, %s32
      %s35 = sphi 0, %s33
      %s45 = sphi 0, %s47
      %s48 = sphi 0, %s45
      %s49 = sphi 0, %s48
      %s65 = sphi 0, %s49
      %s71 = sphi 0, %s73
      %s74 = sphi 0, %s71
      %s75 = sphi 0, %s74
      %s91 = sphi 0, %s75
      %s97 = sphi 0, %s99
      %s100 = sphi 0, %s97
      %s101 = sphi 0, %s100
      %s117 = sphi 0, %s101
      %s123 = sphi 0, %s125
      %s126 = sphi 0, %s123
      %s127 = sphi 0, %s126
      %s143 = sphi 0, %s127
      %s149 = sphi 0, %s151
      %s152 = sphi 0, %s149
      %s153 = sphi 0, %s152
      %s169 = sphi 0, %s153
      %s175 = sphi 0, %s177
      %s178 = sphi 0, %s175
      %s179 = sphi 0, %s178
      %s195 = sphi 0, %s179
      %s201 = sphi 0, %s203
      %s204 = sphi 0, %s201
      %s205 = sphi 0, %s204
      %s221 = sphi 0, %s205
      %s227 = sphi 0, %s229
      %s230 = sphi 0, %s227
      %s231 = sphi 0, %s230
      %s247 = sphi 0, %s231
      %s253 = sphi 0, %s255
      %s256 = sphi 0, %s253
      %s257 = sphi 0, %s256
      %s273 = sphi 0, %s257
      %s279 = sphi 0, %s281
      %s282 = sphi 0, %s279
      %s283 = sphi 0, %s282
      %s299 = sphi 0, %s283
      %s303 = sphi 0, %s303
      %s305 = sphi 0, %s303
      %s306 = sphi 0, %s305
      %s320 = sphi 0, %s306
      %s326 = sphi 0, %s328
      %s329 = sphi 0, %s326
      %s330 = sphi 0, %s329
      %s346 = sphi 0, %s330
      %s354 = sphi 0, %s356
      %s357 = sphi 0, %s354
      %s358 = sphi 0, %s357
      %s374 = sphi 0, %s358
    $region4: #{tpu_custom_call.1} parent=1 // loop_header_branch
      %26 = sbr.rel (%p24) target = $region8
    $region5: #{tpu_custom_call.1} parent=1 // loop_body
      %s28 = ssub.s32 %s23, 1
      %s29 = ssub.s32 %s23, 2
      %s36 = sadd.s32 1, %s31
      %p37 = scmp.ge.s32.totalorder %s36, 4
      %s38 = scalar_select %p37, 0, %s36
      %s39 = sadd.s32 1, %s30
      %s40 = scalar_select %p37, %s39, %s30
      %p41 = scmp.ge.s32.totalorder %s40, 1
      %s42 = scalar_select %p41, 0, %s40
      %s43 = ssub.s32 %s30, %s42
      %p44 = scmp.eq.s32.totalorder %s43, 0
      %s46 = sadd.s32 %s45, 1
      %s47 = scalar_select %p44, %s45, %s46
      %p50 = pneg %p44
      %p51 = scmp.eq.s32.totalorder %s23, 3
      %p52 = por %p50, %p51
      %p53 = scmp.ne.s32.totalorder %s45, %s48
      %p54 = scmp.eq.s32.totalorder %s23, 0
      %p55 = por %p53, %p54
      %p56 = scmp.ne.s32.totalorder %s45, %s48
      %p57 = scmp.eq.s32.totalorder %s28, 3
      %p58 = por %p56, %p57
      %p59 = scmp.ne.s32.totalorder %s48, %s49
      %p60 = scmp.eq.s32.totalorder %s28, 0
      %p61 = por %p59, %p60
      %p62 = scmp.ne.s32.totalorder %s48, %s49
      %p63 = scmp.eq.s32.totalorder %s29, 3
      %p64 = por %p62, %p63
      %p66 = scmp.ne.s32.totalorder %s49, %s65
      %p67 = scmp.eq.s32.totalorder %s29, 0
      %p68 = por %p66, %p67
      %s69 = ssub.s32 %s30, %s42
      %p70 = scmp.eq.s32.totalorder %s69, 0
      %s72 = sadd.s32 %s71, 1
      %s73 = scalar_select %p70, %s71, %s72
      %p76 = pneg %p70
      %p77 = scmp.eq.s32.totalorder %s23, 3
      %p78 = por %p76, %p77
      %p79 = scmp.ne.s32.totalorder %s71, %s74
      %p80 = scmp.eq.s32.totalorder %s23, 0
      %p81 = por %p79, %p80
      %p82 = scmp.ne.s32.totalorder %s71, %s74
      %p83 = scmp.eq.s32.totalorder %s28, 3
      %p84 = por %p82, %p83
      %p85 = scmp.ne.s32.totalorder %s74, %s75
      %p86 = scmp.eq.s32.totalorder %s28, 0
      %p87 = por %p85, %p86
      %p88 = scmp.ne.s32.totalorder %s74, %s75
      %p89 = scmp.eq.s32.totalorder %s29, 3
      %p90 = por %p88, %p89
      %p92 = scmp.ne.s32.totalorder %s75, %s91
      %p93 = scmp.eq.s32.totalorder %s29, 0
      %p94 = por %p92, %p93
      %s95 = ssub.s32 %s30, %s42
      %p96 = scmp.eq.s32.totalorder %s95, 0
      %s98 = sadd.s32 %s97, 1
      %s99 = scalar_select %p96, %s97, %s98
      %p102 = pneg %p96
      %p103 = scmp.eq.s32.totalorder %s23, 3
      %p104 = por %p102, %p103
      %p105 = scmp.ne.s32.totalorder %s97, %s100
      %p106 = scmp.eq.s32.totalorder %s23, 0
      %p107 = por %p105, %p106
      %p108 = scmp.ne.s32.totalorder %s97, %s100
      %p109 = scmp.eq.s32.totalorder %s28, 3
      %p110 = por %p108, %p109
      %p111 = scmp.ne.s32.totalorder %s100, %s101
      %p112 = scmp.eq.s32.totalorder %s28, 0
      %p113 = por %p111, %p112
      %p114 = scmp.ne.s32.totalorder %s100, %s101
      %p115 = scmp.eq.s32.totalorder %s29, 3
      %p116 = por %p114, %p115
      %p118 = scmp.ne.s32.totalorder %s101, %s117
      %p119 = scmp.eq.s32.totalorder %s29, 0
      %p120 = por %p118, %p119
      %s121 = ssub.s32 %s31, %s38
      %p122 = scmp.eq.s32.totalorder %s121, 0
      %s124 = sadd.s32 %s123, 1
      %s125 = scalar_select %p122, %s123, %s124
      %p128 = pneg %p122
      %p129 = scmp.eq.s32.totalorder %s23, 3
      %p130 = por %p128, %p129
      %p131 = scmp.ne.s32.totalorder %s123, %s126
      %p132 = scmp.eq.s32.totalorder %s23, 0
      %p133 = por %p131, %p132
      %p134 = scmp.ne.s32.totalorder %s123, %s126
      %p135 = scmp.eq.s32.totalorder %s28, 3
      %p136 = por %p134, %p135
      %p137 = scmp.ne.s32.totalorder %s126, %s127
      %p138 = scmp.eq.s32.totalorder %s28, 0
      %p139 = por %p137, %p138
      %p140 = scmp.ne.s32.totalorder %s126, %s127
      %p141 = scmp.eq.s32.totalorder %s29, 3
      %p142 = por %p140, %p141
      %p144 = scmp.ne.s32.totalorder %s127, %s143
      %p145 = scmp.eq.s32.totalorder %s29, 0
      %p146 = por %p144, %p145
      %s147 = ssub.s32 %s31, %s38
      %p148 = scmp.eq.s32.totalorder %s147, 0
      %s150 = sadd.s32 %s149, 1
      %s151 = scalar_select %p148, %s149, %s150
      %p154 = pneg %p148
      %p155 = scmp.eq.s32.totalorder %s23, 3
      %p156 = por %p154, %p155
      %p157 = scmp.ne.s32.totalorder %s149, %s152
      %p158 = scmp.eq.s32.totalorder %s23, 0
      %p159 = por %p157, %p158
      %p160 = scmp.ne.s32.totalorder %s149, %s152
      %p161 = scmp.eq.s32.totalorder %s28, 3
      %p162 = por %p160, %p161
      %p163 = scmp.ne.s32.totalorder %s152, %s153
      %p164 = scmp.eq.s32.totalorder %s28, 0
      %p165 = por %p163, %p164
      %p166 = scmp.ne.s32.totalorder %s152, %s153
      %p167 = scmp.eq.s32.totalorder %s29, 3
      %p168 = por %p166, %p167
      %p170 = scmp.ne.s32.totalorder %s153, %s169
      %p171 = scmp.eq.s32.totalorder %s29, 0
      %p172 = por %p170, %p171
      %s173 = ssub.s32 %s31, %s38
      %p174 = scmp.eq.s32.totalorder %s173, 0
      %s176 = sadd.s32 %s175, 1
      %s177 = scalar_select %p174, %s175, %s176
      %p180 = pneg %p174
      %p181 = scmp.eq.s32.totalorder %s23, 3
      %p182 = por %p180, %p181
      %p183 = scmp.ne.s32.totalorder %s175, %s178
      %p184 = scmp.eq.s32.totalorder %s23, 0
      %p185 = por %p183, %p184
      %p186 = scmp.ne.s32.totalorder %s175, %s178
      %p187 = scmp.eq.s32.totalorder %s28, 3
      %p188 = por %p186, %p187
      %p189 = scmp.ne.s32.totalorder %s178, %s179
      %p190 = scmp.eq.s32.totalorder %s28, 0
      %p191 = por %p189, %p190
      %p192 = scmp.ne.s32.totalorder %s178, %s179
      %p193 = scmp.eq.s32.totalorder %s29, 3
      %p194 = por %p192, %p193
      %p196 = scmp.ne.s32.totalorder %s179, %s195
      %p197 = scmp.eq.s32.totalorder %s29, 0
      %p198 = por %p196, %p197
      %s199 = ssub.s32 %s31, %s38
      %p200 = scmp.eq.s32.totalorder %s199, 0
      %s202 = sadd.s32 %s201, 1
      %s203 = scalar_select %p200, %s201, %s202
      %p206 = pneg %p200
      %p207 = scmp.eq.s32.totalorder %s23, 3
      %p208 = por %p206, %p207
      %p209 = scmp.ne.s32.totalorder %s201, %s204
      %p210 = scmp.eq.s32.totalorder %s23, 0
      %p211 = por %p209, %p210
      %p212 = scmp.ne.s32.totalorder %s201, %s204
      %p213 = scmp.eq.s32.totalorder %s28, 3
      %p214 = por %p212, %p213
      %p215 = scmp.ne.s32.totalorder %s204, %s205
      %p216 = scmp.eq.s32.totalorder %s28, 0
      %p217 = por %p215, %p216
      %p218 = scmp.ne.s32.totalorder %s204, %s205
      %p219 = scmp.eq.s32.totalorder %s29, 3
      %p220 = por %p218, %p219
      %p222 = scmp.ne.s32.totalorder %s205, %s221
      %p223 = scmp.eq.s32.totalorder %s29, 0
      %p224 = por %p222, %p223
      %s225 = ssub.s32 %s31, %s38
      %p226 = scmp.eq.s32.totalorder %s225, 0
      %s228 = sadd.s32 %s227, 1
      %s229 = scalar_select %p226, %s227, %s228
      %p232 = pneg %p226
      %p233 = scmp.eq.s32.totalorder %s23, 3
      %p234 = por %p232, %p233
      %p235 = scmp.ne.s32.totalorder %s227, %s230
      %p236 = scmp.eq.s32.totalorder %s23, 0
      %p237 = por %p235, %p236
      %p238 = scmp.ne.s32.totalorder %s227, %s230
      %p239 = scmp.eq.s32.totalorder %s28, 3
      %p240 = por %p238, %p239
      %p241 = scmp.ne.s32.totalorder %s230, %s231
      %p242 = scmp.eq.s32.totalorder %s28, 0
      %p243 = por %p241, %p242
      %p244 = scmp.ne.s32.totalorder %s230, %s231
      %p245 = scmp.eq.s32.totalorder %s29, 3
      %p246 = por %p244, %p245
      %p248 = scmp.ne.s32.totalorder %s231, %s247
      %p249 = scmp.eq.s32.totalorder %s29, 0
      %p250 = por %p248, %p249
      %s251 = ssub.s32 %s31, %s38
      %p252 = scmp.eq.s32.totalorder %s251, 0
      %s254 = sadd.s32 %s253, 1
      %s255 = scalar_select %p252, %s253, %s254
      %p258 = pneg %p252
      %p259 = scmp.eq.s32.totalorder %s23, 3
      %p260 = por %p258, %p259
      %p261 = scmp.ne.s32.totalorder %s253, %s256
      %p262 = scmp.eq.s32.totalorder %s23, 0
      %p263 = por %p261, %p262
      %p264 = scmp.ne.s32.totalorder %s253, %s256
      %p265 = scmp.eq.s32.totalorder %s28, 3
      %p266 = por %p264, %p265
      %p267 = scmp.ne.s32.totalorder %s256, %s257
      %p268 = scmp.eq.s32.totalorder %s28, 0
      %p269 = por %p267, %p268
      %p270 = scmp.ne.s32.totalorder %s256, %s257
      %p271 = scmp.eq.s32.totalorder %s29, 3
      %p272 = por %p270, %p271
      %p274 = scmp.ne.s32.totalorder %s257, %s273
      %p275 = scmp.eq.s32.totalorder %s29, 0
      %p276 = por %p274, %p275
      %s277 = ssub.s32 %s31, %s38
      %p278 = scmp.eq.s32.totalorder %s277, 0
      %s280 = sadd.s32 %s279, 1
      %s281 = scalar_select %p278, %s279, %s280
      %p284 = pneg %p278
      %p285 = scmp.eq.s32.totalorder %s23, 3
      %p286 = por %p284, %p285
      %p287 = scmp.ne.s32.totalorder %s279, %s282
      %p288 = scmp.eq.s32.totalorder %s23, 0
      %p289 = por %p287, %p288
      %p290 = scmp.ne.s32.totalorder %s279, %s282
      %p291 = scmp.eq.s32.totalorder %s28, 3
      %p292 = por %p290, %p291
      %p293 = scmp.ne.s32.totalorder %s282, %s283
      %p294 = scmp.eq.s32.totalorder %s28, 0
      %p295 = por %p293, %p294
      %p296 = scmp.ne.s32.totalorder %s282, %s283
      %p297 = scmp.eq.s32.totalorder %s29, 3
      %p298 = por %p296, %p297
      %p300 = scmp.ne.s32.totalorder %s283, %s299
      %p301 = scmp.eq.s32.totalorder %s29, 0
      %p302 = por %p300, %p301
      %s304 = sadd.s32 %s303, 1
      %p307 = scmp.eq.s32.totalorder %s23, 3
      %p308 = scmp.ne.s32.totalorder %s303, %s305
      %p309 = scmp.eq.s32.totalorder %s23, 0
      %p310 = por %p308, %p309
      %p311 = scmp.ne.s32.totalorder %s303, %s305
      %p312 = scmp.eq.s32.totalorder %s28, 3
      %p313 = por %p311, %p312
      %p314 = scmp.ne.s32.totalorder %s305, %s306
      %p315 = scmp.eq.s32.totalorder %s28, 0
      %p316 = por %p314, %p315
      %p317 = scmp.ne.s32.totalorder %s305, %s306
      %p318 = scmp.eq.s32.totalorder %s29, 3
      %p319 = por %p317, %p318
      %p321 = scmp.ne.s32.totalorder %s306, %s320
      %p322 = scmp.eq.s32.totalorder %s29, 0
      %p323 = por %p321, %p322
      %s324 = ssub.s32 %s30, %s42
      %p325 = scmp.eq.s32.totalorder %s324, 0
      %s327 = sadd.s32 %s326, 1
      %s328 = scalar_select %p325, %s326, %s327
      %p331 = pneg %p325
      %p332 = scmp.eq.s32.totalorder %s23, 3
      %p333 = por %p331, %p332
      %p334 = scmp.ne.s32.totalorder %s326, %s329
      %p335 = scmp.eq.s32.totalorder %s23, 0
      %p336 = por %p334, %p335
      %p337 = scmp.ne.s32.totalorder %s326, %s329
      %p338 = scmp.eq.s32.totalorder %s28, 3
      %p339 = por %p337, %p338
      %p340 = scmp.ne.s32.totalorder %s329, %s330
      %p341 = scmp.eq.s32.totalorder %s28, 0
      %p342 = por %p340, %p341
      %p343 = scmp.ne.s32.totalorder %s329, %s330
      %p344 = scmp.eq.s32.totalorder %s29, 3
      %p345 = por %p343, %p344
      %p347 = scmp.ne.s32.totalorder %s330, %s346
      %p348 = scmp.eq.s32.totalorder %s29, 0
      %p349 = por %p347, %p348
      %s350 = ssub.s32 %s30, %s42
      %s351 = ssub.s32 %s31, %s38
      %s352 = sor.u32 %s350, %s351
      %p353 = scmp.eq.s32.totalorder %s352, 0
      %s355 = sadd.s32 %s354, 1
      %s356 = scalar_select %p353, %s354, %s355
      %p359 = pneg %p353
      %p360 = scmp.eq.s32.totalorder %s23, 3
      %p361 = por %p359, %p360
      %p362 = scmp.ne.s32.totalorder %s354, %s357
      %p363 = scmp.eq.s32.totalorder %s23, 0
      %p364 = por %p362, %p363
      %p365 = scmp.ne.s32.totalorder %s354, %s357
      %p366 = scmp.eq.s32.totalorder %s28, 3
      %p367 = por %p365, %p366
      %p368 = scmp.ne.s32.totalorder %s357, %s358
      %p369 = scmp.eq.s32.totalorder %s28, 0
      %p370 = por %p368, %p369
      %p371 = scmp.ne.s32.totalorder %s357, %s358
      %p372 = scmp.eq.s32.totalorder %s29, 3
      %p373 = por %p371, %p372
      %p375 = scmp.ne.s32.totalorder %s358, %s374
      %p376 = scmp.eq.s32.totalorder %s29, 0
      %p377 = por %p375, %p376
      %p378 = scmp.le.s32.totalorder 1, %s23
      %p379 = scmp.lt.s32.totalorder %s23, 5
      %p380 = pnand %p378, %p379
      %p381 = pneg %p380
      // Predicated region
      $region9: #{tpu_custom_call.1} parent=5 // pred_check
        _
      $region10: #{tpu_custom_call.1} parent=5 // pred_check_branch
        %383 = sbr.rel (%p380) target = $region12
      $region11: #{tpu_custom_call.1} parent=5 // pred_region
        %s384 = ssub.s32 %s23, 1
        // Predicated region
        $region13: #{tpu_custom_call.1} parent=11 // pred_check
          %p385 = pneg %p61
        $region14: #{tpu_custom_call.1} parent=11 // pred_check_branch
          %387 = sbr.rel (%p385) target = $region16
        $region15: #{tpu_custom_call.1} parent=11 // pred_region
          %s388 = smul.u32 8, %s32
          %p389 = scmp.lt.s32.totalorder %s388, 7
          %s390 = scalar_select %p389, %s388, 7
          %s391 = smul.addr %s390, 8
          %s392 = scalar_lea.vmem %s0, %s391
          %s393 = smul.u32 8, %s32
        $region16: #{tpu_custom_call.1} parent=11 // pred_fallthru
          _
        // Predicated region
        $region17: #{tpu_custom_call.1} parent=11 // pred_check
          %p394 = pneg %p87
        $region18: #{tpu_custom_call.1} parent=11 // pred_check_branch
          %396 = sbr.rel (%p394) target = $region20
        $region19: #{tpu_custom_call.1} parent=11 // pred_region
          %s397 = smul.u32 8, %s32
          %p398 = scmp.lt.s32.totalorder %s397, 7
          %s399 = scalar_select %p398, %s397, 7
          %s400 = smul.addr %s399, 8
          %s401 = scalar_lea.vmem %s1, %s400
          %s402 = smul.u32 8, %s32
        $region20: #{tpu_custom_call.1} parent=11 // pred_fallthru
          _
        // Predicated region
        $region21: #{tpu_custom_call.1} parent=11 // pred_check
          %p403 = pneg %p113
        $region22: #{tpu_custom_call.1} parent=11 // pred_check_branch
          %405 = sbr.rel (%p403) target = $region24
        $region23: #{tpu_custom_call.1} parent=11 // pred_region
          %s406 = smul.u32 8, %s32
          %p407 = scmp.lt.s32.totalorder %s406, 7
          %s408 = scalar_select %p407, %s406, 7
          %s409 = smul.addr %s408, 8
          %s410 = scalar_lea.vmem %s2, %s409
          %s411 = smul.u32 8, %s32
        $region24: #{tpu_custom_call.1} parent=11 // pred_fallthru
          _
        // Predicated region
        $region25: #{tpu_custom_call.1} parent=11 // pred_check
          %p412 = pneg %p316
        $region26: #{tpu_custom_call.1} parent=11 // pred_check_branch
          %414 = sbr.rel (%p412) target = $region28
        $region27: #{tpu_custom_call.1} parent=11 // pred_region
          _
        $region28: #{tpu_custom_call.1} parent=11 // pred_fallthru
          _
      $region12: #{tpu_custom_call.1} parent=5 // pred_fallthru
        _
      %p415 = scmp.lt.s32.totalorder %s23, 4
      // Predicated region
      $region29: #{tpu_custom_call.1} parent=5 // pred_check
        %p416 = pneg %p415
      $region30: #{tpu_custom_call.1} parent=5 // pred_check_branch
        %418 = sbr.rel (%p416) target = $region32
      $region31: #{tpu_custom_call.1} parent=5 // pred_region
        // Predicated region
        $region33: #{tpu_custom_call.1} parent=31 // pred_check
          %p419 = pneg %p133
        $region34: #{tpu_custom_call.1} parent=31 // pred_check_branch
          %421 = sbr.rel (%p419) target = $region36
        $region35: #{tpu_custom_call.1} parent=31 // pred_region
          %p422 = scmp.lt.s32.totalorder %s31, 3
          %s423 = scalar_select %p422, %s31, 3
          %s424 = smul.addr %s423, 4
          %s425 = smul.addr %s424, 8
          %s426 = scalar_lea.vmem %s3, %s425
        $region36: #{tpu_custom_call.1} parent=31 // pred_fallthru
          _
        // Predicated region
        $region37: #{tpu_custom_call.1} parent=31 // pred_check
          %p427 = pneg %p159
        $region38: #{tpu_custom_call.1} parent=31 // pred_check_branch
          %429 = sbr.rel (%p427) target = $region40
        $region39: #{tpu_custom_call.1} parent=31 // pred_region
          %p430 = scmp.lt.s32.totalorder %s31, 3
          %s431 = scalar_select %p430, %s31, 3
          %s432 = scalar_lea.vmem %s4, %s431
        $region40: #{tpu_custom_call.1} parent=31 // pred_fallthru
          _
        // Predicated region
        $region41: #{tpu_custom_call.1} parent=31 // pred_check
          %p433 = pneg %p185
        $region42: #{tpu_custom_call.1} parent=31 // pred_check_branch
          %435 = sbr.rel (%p433) target = $region44
        $region43: #{tpu_custom_call.1} parent=31 // pred_region
          %p436 = scmp.lt.s32.totalorder %s31, 3
          %s437 = scalar_select %p436, %s31, 3
          %s438 = smul.addr %s437, 4
          %s439 = smul.addr %s438, 8
          %s440 = scalar_lea.vmem %s5, %s439
        $region44: #{tpu_custom_call.1} parent=31 // pred_fallthru
          _
        // Predicated region
        $region45: #{tpu_custom_call.1} parent=31 // pred_check
          %p441 = pneg %p211
        $region46: #{tpu_custom_call.1} parent=31 // pred_check_branch
          %443 = sbr.rel (%p441) target = $region48
        $region47: #{tpu_custom_call.1} parent=31 // pred_region
          %p444 = scmp.lt.s32.totalorder %s31, 3
          %s445 = scalar_select %p444, %s31, 3
          %s446 = scalar_lea.vmem %s6, %s445
        $region48: #{tpu_custom_call.1} parent=31 // pred_fallthru
          _
        // Predicated region
        $region49: #{tpu_custom_call.1} parent=31 // pred_check
          %p447 = pneg %p237
        $region50: #{tpu_custom_call.1} parent=31 // pred_check_branch
          %449 = sbr.rel (%p447) target = $region52
        $region51: #{tpu_custom_call.1} parent=31 // pred_region
          %p450 = scmp.lt.s32.totalorder %s31, 3
          %s451 = scalar_select %p450, %s31, 3
          %s452 = smul.addr %s451, 4
          %s453 = smul.addr %s452, 8
          %s454 = scalar_lea.vmem %s7, %s453
        $region52: #{tpu_custom_call.1} parent=31 // pred_fallthru
          _
        // Predicated region
        $region53: #{tpu_custom_call.1} parent=31 // pred_check
          %p455 = pneg %p263
        $region54: #{tpu_custom_call.1} parent=31 // pred_check_branch
          %457 = sbr.rel (%p455) target = $region56
        $region55: #{tpu_custom_call.1} parent=31 // pred_region
          %p458 = scmp.lt.s32.totalorder %s31, 3
          %s459 = scalar_select %p458, %s31, 3
          %s460 = scalar_lea.vmem %s8, %s459
        $region56: #{tpu_custom_call.1} parent=31 // pred_fallthru
          _
        // Predicated region
        $region57: #{tpu_custom_call.1} parent=31 // pred_check
          %p461 = pneg %p289
        $region58: #{tpu_custom_call.1} parent=31 // pred_check_branch
          %463 = sbr.rel (%p461) target = $region60
        $region59: #{tpu_custom_call.1} parent=31 // pred_region
          %p464 = scmp.lt.s32.totalorder %s31, 3
          %s465 = scalar_select %p464, %s31, 3
          %s466 = smul.addr %s465, 8
          %s467 = scalar_lea.vmem %s9, %s466
        $region60: #{tpu_custom_call.1} parent=31 // pred_fallthru
          _
      $region32: #{tpu_custom_call.1} parent=5 // pred_fallthru
        _
      %p468 = scmp.le.s32.totalorder 1, %s23
      %p469 = scmp.lt.s32.totalorder %s23, 5
      %p470 = pnand %p468, %p469
      %p471 = pneg %p470
      // Predicated region
      $region61: #{tpu_custom_call.1} parent=5 // pred_check
        _
      $region62: #{tpu_custom_call.1} parent=5 // pred_check_branch
        %473 = sbr.rel (%p470) target = $region64
      $region63: #{tpu_custom_call.1} parent=5 // pred_region
        %s474 = ssub.s32 %s23, 1
        %s475 = smul.u32 8, %s32
        %p476 = scmp.lt.s32.totalorder %s475, 7
        %s477 = scalar_select %p476, %s475, 7
        %s478 = smul.addr %s477, 8
        %s479 = scalar_lea.vmem %s0, %s478
        %p480 = pneg %p61
        %p481 = pneg %p58
        %s482 = smul.u32 8, %s32
        %p483 = scmp.lt.s32.totalorder %s482, 7
        %s484 = scalar_select %p483, %s482, 7
        %s485 = smul.addr %s484, 8
        %s486 = scalar_lea.vmem %s1, %s485
        %p487 = pneg %p87
        %p488 = pneg %p84
        %s489 = smul.u32 8, %s32
        %p490 = scmp.lt.s32.totalorder %s489, 7
        %s491 = scalar_select %p490, %s489, 7
        %s492 = smul.addr %s491, 8
        %s493 = scalar_lea.vmem %s2, %s492
        %p494 = pneg %p113
        %p495 = pneg %p110
        %p496 = scmp.lt.s32.totalorder %s33, 3
        %s497 = scalar_select %p496, %s33, 3
        %s498 = smul.addr %s497, 4
        %s499 = smul.addr %s498, 8
        %s500 = scalar_lea.vmem %s3, %s499
        %p501 = pneg %p139
        %p502 = pneg %p136
        %p503 = scmp.lt.s32.totalorder %s33, 3
        %s504 = scalar_select %p503, %s33, 3
        %s505 = scalar_lea.vmem %s4, %s504
        %p506 = pneg %p165
        %p507 = pneg %p162
        %p508 = scmp.lt.s32.totalorder %s33, 3
        %s509 = scalar_select %p508, %s33, 3
        %s510 = smul.addr %s509, 4
        %s511 = smul.addr %s510, 8
        %s512 = scalar_lea.vmem %s5, %s511
        %p513 = pneg %p191
        %p514 = pneg %p188
        %p515 = scmp.lt.s32.totalorder %s33, 3
        %s516 = scalar_select %p515, %s33, 3
        %s517 = scalar_lea.vmem %s6, %s516
        %p518 = pneg %p217
        %p519 = pneg %p214
        %p520 = scmp.lt.s32.totalorder %s33, 3
        %s521 = scalar_select %p520, %s33, 3
        %s522 = smul.addr %s521, 4
        %s523 = smul.addr %s522, 8
        %s524 = scalar_lea.vmem %s7, %s523
        %p525 = pneg %p243
        %p526 = pneg %p240
        %p527 = scmp.lt.s32.totalorder %s33, 3
        %s528 = scalar_select %p527, %s33, 3
        %s529 = scalar_lea.vmem %s8, %s528
        %p530 = pneg %p269
        %p531 = pneg %p266
        %p532 = scmp.lt.s32.totalorder %s33, 3
        %s533 = scalar_select %p532, %s33, 3
        %s534 = smul.addr %s533, 8
        %s535 = scalar_lea.vmem %s9, %s534
        %p536 = pneg %p295
        %p537 = pneg %p292
        %p538 = pneg %p316
        %p539 = pneg %p313
        %p540 = pneg %p342
        %p541 = pneg %p339
        %p542 = pneg %p370
        %p543 = pneg %p367
        %s544 = sand.u32 %s357, 1
        %s545 = scalar_lea.sflag [#allocation5], %s544
        %s546 = sand.u32 %s357, 1
        %s547 = smul.addr %s546, 64
        %s548 = scalar_lea.vmem [#allocation4], %s547
        %s549 = smul.u32 8, %s32
        %p550 = scmp.lt.s32.totalorder %s549, 7
        %s551 = scalar_select %p550, %s549, 7
        %s552 = smul.addr %s551, 8
        %s553 = scalar_lea.vmem %s0, %s552
        %s554 = smul.u32 8, %s32
        %s555 = smul.u32 8, %s32
        %p556 = scmp.lt.s32.totalorder %s555, 7
        %s557 = scalar_select %p556, %s555, 7
        %s558 = smul.addr %s557, 8
        %s559 = scalar_lea.vmem %s1, %s558
        %s560 = smul.u32 8, %s32
        %s561 = smul.u32 8, %s32
        %p562 = scmp.lt.s32.totalorder %s561, 7
        %s563 = scalar_select %p562, %s561, 7
        %s564 = smul.addr %s563, 8
        %s565 = scalar_lea.vmem %s2, %s564
        %s566 = smul.u32 8, %s32
        %p567 = scmp.lt.s32.totalorder %s33, 3
        %s568 = scalar_select %p567, %s33, 3
        %s569 = smul.addr %s568, 4
        %s570 = smul.addr %s569, 8
        %s571 = scalar_lea.vmem %s3, %s570
        %p572 = scmp.lt.s32.totalorder %s33, 3
        %s573 = scalar_select %p572, %s33, 3
        %s574 = scalar_lea.vmem %s4, %s573
        %p575 = scmp.lt.s32.totalorder %s33, 3
        %s576 = scalar_select %p575, %s33, 3
        %s577 = smul.addr %s576, 4
        %s578 = smul.addr %s577, 8
        %s579 = scalar_lea.vmem %s5, %s578
        %p580 = scmp.lt.s32.totalorder %s33, 3
        %s581 = scalar_select %p580, %s33, 3
        %s582 = scalar_lea.vmem %s6, %s581
        %p583 = scmp.lt.s32.totalorder %s33, 3
        %s584 = scalar_select %p583, %s33, 3
        %s585 = smul.addr %s584, 4
        %s586 = smul.addr %s585, 8
        %s587 = scalar_lea.vmem %s7, %s586
        %p588 = scmp.lt.s32.totalorder %s33, 3
        %s589 = scalar_select %p588, %s33, 3
        %s590 = scalar_lea.vmem %s8, %s589
        %p591 = scmp.lt.s32.totalorder %s33, 3
        %s592 = scalar_select %p591, %s33, 3
        %s593 = smul.addr %s592, 8
        %s594 = scalar_lea.vmem %s9, %s593
        %s595 = smul.u32 8, %s32
        %s596 = smul.u32 8, %s32
        %v597 = vld [vmem:[%s553] sm:$0xff]
        %v598 = vld [vmem:[%s553 + $0x8] sm:$0xff]
        %v599 = vld [vmem:[%s553 + $0x10] sm:$0xff]
        %v600 = vld [vmem:[%s553 + $0x18] sm:$0xff]
        %v601 = vld [vmem:[%s553 + $0x20] sm:$0xff]
        %v602 = vld [vmem:[%s553 + $0x28] sm:$0xff]
        %v603 = vld [vmem:[%s553 + $0x30] sm:$0xff]
        %v604 = vld [vmem:[%s553 + $0x38] sm:$0xff]
        %v605 = vld [vmem:[%s559] sm:$0xff]
        %v606 = vld [vmem:[%s559 + $0x8] sm:$0xff]
        %v607 = vld [vmem:[%s559 + $0x10] sm:$0xff]
        %v608 = vld [vmem:[%s559 + $0x18] sm:$0xff]
        %v609 = vld [vmem:[%s559 + $0x20] sm:$0xff]
        %v610 = vld [vmem:[%s559 + $0x28] sm:$0xff]
        %v611 = vld [vmem:[%s559 + $0x30] sm:$0xff]
        %v612 = vld [vmem:[%s559 + $0x38] sm:$0xff]
        %v613 = vld [vmem:[%s565] sm:$0xff]
        %v614 = vld [vmem:[%s565 + $0x8] sm:$0xff]
        %v615 = vld [vmem:[%s565 + $0x10] sm:$0xff]
        %v616 = vld [vmem:[%s565 + $0x18] sm:$0xff]
        %v617 = vld [vmem:[%s565 + $0x20] sm:$0xff]
        %v618 = vld [vmem:[%s565 + $0x28] sm:$0xff]
        %v619 = vld [vmem:[%s565 + $0x30] sm:$0xff]
        %v620 = vld [vmem:[%s565 + $0x38] sm:$0xff]
        %v621 = vld [vmem:[%s571] sm:$0xff]
        %v622 = vld [vmem:[%s571 + $0x8] sm:$0xff]
        %v623 = vld [vmem:[%s571 + $0x10] sm:$0xff]
        %v624 = vld [vmem:[%s571 + $0x18] sm:$0xff]
        %v625 = vld [vmem:[%s574] sm:$0x1]
        %v627 = vlaneseq
        %v628 = vshrl.u32 %v627, 7
        %v629 = vsub.s32 0, %v628
        %v630 = vrot.slane %v625, %v629
        %vm632 = vcmask 261120
        %v634 = vsel %vm632, %v597, 0
        %v637 = vsel %vm632, %v598, 0
        %v640 = vsel %vm632, %v599, 0
        %v643 = vsel %vm632, %v600, 0
        %v646 = vsel %vm632, %v601, 0
        %v649 = vsel %vm632, %v602, 0
        %v652 = vsel %vm632, %v603, 0
        %v655 = vsel %vm632, %v604, 0
        %657 = vmatprep.subr.mxu0 0.0
        %658 = vmatpush1.msra.mxu0 %v621
        %659 = vmatprep.subr.mxu0 0.0
        %660 = vmatpush1.msra.mxu0 %v622
        %661 = vmatprep.subr.mxu0 0.0
        %662 = vmatpush1.msra.mxu0 %v623
        %663 = vmatprep.subr.mxu0 0.0
        %664 = vmatpush1.msra.mxu0 %v624
        %665 = vmatprep.subr.mxu0 0.0
        %666 = vmatpush1.msra.mxu0 0.0
        %667 = vmatprep.subr.mxu0 0.0
        %668 = vmatpush1.msra.mxu0 0.0
        %669 = vmatprep.subr.mxu0 0.0
        %670 = vmatpush1.msra.mxu0 0.0
        %671 = vmatprep.subr.mxu0 0.0
        %672 = vmatpush1.msra.mxu0 0.0
        %673 = vmatprep.subr.mxu0 0.0
        %674 = vmatpush1.msra.mxu0 0.0
        %675 = vmatprep.subr.mxu0 0.0
        %676 = vmatpush1.msra.mxu0 0.0
        %677 = vmatprep.subr.mxu0 0.0
        %678 = vmatpush1.msra.mxu0 0.0
        %679 = vmatprep.subr.mxu0 0.0
        %680 = vmatpush1.msra.mxu0 0.0
        %681 = vmatprep.subr.mxu0 0.0
        %682 = vmatpush1.msra.mxu0 0.0
        %683 = vmatprep.subr.mxu0 0.0
        %684 = vmatpush1.msra.mxu0 0.0
        %685 = vmatprep.subr.mxu0 0.0
        %686 = vmatpush1.msra.mxu0 0.0
        %687 = vmatprep.subr.mxu0 0.0
        %688 = vmatpush1.msra.mxu0 0.0
        %689 = vmatprep.subr.mxu0 0.0
        %690 = vmatpush1.msra.mxu0 0.0
        %691 = vmatprep.subr.mxu0 0.0
        %692 = vmatpush1.msra.mxu0 0.0
        %693 = vmatprep.subr.mxu0 0.0
        %694 = vmatpush1.msra.mxu0 0.0
        %695 = vmatprep.subr.mxu0 0.0
        %696 = vmatpush1.msra.mxu0 0.0
        %697 = vmatprep.subr.mxu0 0.0
        %698 = vmatpush1.msra.mxu0 0.0
        %699 = vmatprep.subr.mxu0 0.0
        %700 = vmatpush1.msra.mxu0 0.0
        %701 = vmatprep.subr.mxu0 0.0
        %702 = vmatpush1.msra.mxu0 0.0
        %703 = vmatprep.subr.mxu0 0.0
        %704 = vmatpush1.msra.mxu0 0.0
        %705 = vmatprep.subr.mxu0 0.0
        %706 = vmatpush1.msra.mxu0 0.0
        %707 = vmatprep.subr.mxu0 0.0
        %708 = vmatpush1.msra.mxu0 0.0
        %709 = vmatprep.subr.mxu0 0.0
        %710 = vmatpush1.msra.mxu0 0.0
        %711 = vmatprep.subr.mxu0 0.0
        %712 = vmatpush1.msra.mxu0 0.0
        %713 = vmatprep.subr.mxu0 0.0
        %714 = vmatpush1.msra.mxu0 0.0
        %715 = vmatprep.subr.mxu0 0.0
        %716 = vmatpush1.msra.mxu0 0.0
        %717 = vmatprep.subr.mxu0 0.0
        %718 = vmatpush1.msra.mxu0 0.0
        %719 = vmatprep.subr.mxu0 0.0
        %720 = vmatpush1.msra.mxu0 0.0
        %721 = vmatprep.mubr.f32.mxu0 0.0
        %722 = vmatmul.mubr.f32.gmra.mrb[0].mxu0 %v634
        %v723 = vpop.f32.mrb[0].mxu0
        %v724 = vadd.f32 %v630, %v723
        %v725 = vpop.f32.mrb[0].mxu0
        %726 = vmatprep.mubr.f32.mxu0 0.0
        %727 = vmatmul.mubr.f32.gmra.mrb[0].mxu0 %v637
        %v728 = vpop.f32.mrb[0].mxu0
        %v729 = vadd.f32 %v630, %v728
        %v730 = vpop.f32.mrb[0].mxu0
        %731 = vmatprep.mubr.f32.mxu0 0.0
        %732 = vmatmul.mubr.f32.gmra.mrb[0].mxu0 %v640
        %v733 = vpop.f32.mrb[0].mxu0
        %v734 = vadd.f32 %v630, %v733
        %v735 = vpop.f32.mrb[0].mxu0
        %736 = vmatprep.mubr.f32.mxu0 0.0
        %737 = vmatmul.mubr.f32.gmra.mrb[0].mxu0 %v643
        %v738 = vpop.f32.mrb[0].mxu0
        %v739 = vadd.f32 %v630, %v738
        %v740 = vpop.f32.mrb[0].mxu0
        %741 = vmatprep.mubr.f32.mxu0 0.0
        %742 = vmatmul.mubr.f32.gmra.mrb[0].mxu0 %v646
        %v743 = vpop.f32.mrb[0].mxu0
        %v744 = vadd.f32 %v630, %v743
        %v745 = vpop.f32.mrb[0].mxu0
        %746 = vmatprep.mubr.f32.mxu0 0.0
        %747 = vmatmul.mubr.f32.gmra.mrb[0].mxu0 %v649
        %v748 = vpop.f32.mrb[0].mxu0
        %v749 = vadd.f32 %v630, %v748
        %v750 = vpop.f32.mrb[0].mxu0
        %751 = vmatprep.mubr.f32.mxu0 0.0
        %752 = vmatmul.mubr.f32.gmra.mrb[0].mxu0 %v652
        %v753 = vpop.f32.mrb[0].mxu0
        %v754 = vadd.f32 %v630, %v753
        %v755 = vpop.f32.mrb[0].mxu0
        %756 = vmatprep.mubr.f32.mxu0 0.0
        %757 = vmatmul.mubr.f32.gmra.mrb[0].mxu0 %v655
        %v758 = vpop.f32.mrb[0].mxu0
        %v759 = vadd.f32 %v630, %v758
        %v760 = vpop.f32.mrb[0].mxu0
        %761 = vdwg.mxu0
        %v762 = vmul.f32 %v724, 0.35355338
        %v763 = vmul.f32 %v729, 0.35355338
        %v764 = vmul.f32 %v734, 0.35355338
        %v765 = vmul.f32 %v739, 0.35355338
        %v766 = vmul.f32 %v744, 0.35355338
        %v767 = vmul.f32 %v749, 0.35355338
        %v768 = vmul.f32 %v754, 0.35355338
        %v769 = vmul.f32 %v759, 0.35355338
        %v770 = vld [vmem:[%s579] sm:$0xff]
        %v771 = vld [vmem:[%s579 + $0x8] sm:$0xff]
        %v772 = vld [vmem:[%s579 + $0x10] sm:$0xff]
        %v773 = vld [vmem:[%s579 + $0x18] sm:$0xff]
        %v774 = vld [vmem:[%s582] sm:$0x1]
        %v776 = vlaneseq
        %v777 = vshrl.u32 %v776, 7
        %v778 = vsub.s32 0, %v777
        %v779 = vrot.slane %v774, %v778
        %v782 = vsel %vm632, %v605, 0
        %v785 = vsel %vm632, %v606, 0
        %v788 = vsel %vm632, %v607, 0
        %v791 = vsel %vm632, %v608, 0
        %v794 = vsel %vm632, %v609, 0
        %v797 = vsel %vm632, %v610, 0
        %v800 = vsel %vm632, %v611, 0
        %v803 = vsel %vm632, %v612, 0
        %805 = vmatprep.subr.mxu0 0.0
        %806 = vmatpush1.msra.mxu0 %v770
        %807 = vmatprep.subr.mxu0 0.0
        %808 = vmatpush1.msra.mxu0 %v771
        %809 = vmatprep.subr.mxu0 0.0
        %810 = vmatpush1.msra.mxu0 %v772
        %811 = vmatprep.subr.mxu0 0.0
        %812 = vmatpush1.msra.mxu0 %v773
        %813 = vmatprep.subr.mxu0 0.0
        %814 = vmatpush1.msra.mxu0 0.0
        %815 = vmatprep.subr.mxu0 0.0
        %816 = vmatpush1.msra.mxu0 0.0
        %817 = vmatprep.subr.mxu0 0.0
        %818 = vmatpush1.msra.mxu0 0.0
        %819 = vmatprep.subr.mxu0 0.0
        %820 = vmatpush1.msra.mxu0 0.0
        %821 = vmatprep.subr.mxu0 0.0
        %822 = vmatpush1.msra.mxu0 0.0
        %823 = vmatprep.subr.mxu0 0.0
        %824 = vmatpush1.msra.mxu0 0.0
        %825 = vmatprep.subr.mxu0 0.0
        %826 = vmatpush1.msra.mxu0 0.0
        %827 = vmatprep.subr.mxu0 0.0
        %828 = vmatpush1.msra.mxu0 0.0
        %829 = vmatprep.subr.mxu0 0.0
        %830 = vmatpush1.msra.mxu0 0.0
        %831 = vmatprep.subr.mxu0 0.0
        %832 = vmatpush1.msra.mxu0 0.0
        %833 = vmatprep.subr.mxu0 0.0
        %834 = vmatpush1.msra.mxu0 0.0
        %835 = vmatprep.subr.mxu0 0.0
        %836 = vmatpush1.msra.mxu0 0.0
        %837 = vmatprep.subr.mxu0 0.0
        %838 = vmatpush1.msra.mxu0 0.0
        %839 = vmatprep.subr.mxu0 0.0
        %840 = vmatpush1.msra.mxu0 0.0
        %841 = vmatprep.subr.mxu0 0.0
        %842 = vmatpush1.msra.mxu0 0.0
        %843 = vmatprep.subr.mxu0 0.0
        %844 = vmatpush1.msra.mxu0 0.0
        %845 = vmatprep.subr.mxu0 0.0
        %846 = vmatpush1.msra.mxu0 0.0
        %847 = vmatprep.subr.mxu0 0.0
        %848 = vmatpush1.msra.mxu0 0.0
        %849 = vmatprep.subr.mxu0 0.0
        %850 = vmatpush1.msra.mxu0 0.0
        %851 = vmatprep.subr.mxu0 0.0
        %852 = vmatpush1.msra.mxu0 0.0
        %853 = vmatprep.subr.mxu0 0.0
        %854 = vmatpush1.msra.mxu0 0.0
        %855 = vmatprep.subr.mxu0 0.0
        %856 = vmatpush1.msra.mxu0 0.0
        %857 = vmatprep.subr.mxu0 0.0
        %858 = vmatpush1.msra.mxu0 0.0
        %859 = vmatprep.subr.mxu0 0.0
        %860 = vmatpush1.msra.mxu0 0.0
        %861 = vmatprep.subr.mxu0 0.0
        %862 = vmatpush1.msra.mxu0 0.0
        %863 = vmatprep.subr.mxu0 0.0
        %864 = vmatpush1.msra.mxu0 0.0
        %865 = vmatprep.subr.mxu0 0.0
        %866 = vmatpush1.msra.mxu0 0.0
        %867 = vmatprep.subr.mxu0 0.0
        %868 = vmatpush1.msra.mxu0 0.0
        %869 = vmatprep.mubr.f32.mxu0 0.0
        %870 = vmatmul.mubr.f32.gmra.mrb[0].mxu0 %v782
        %v871 = vpop.f32.mrb[0].mxu0
        %v872 = vadd.f32 %v779, %v871
        %v873 = vpop.f32.mrb[0].mxu0
        %874 = vmatprep.mubr.f32.mxu0 0.0
        %875 = vmatmul.mubr.f32.gmra.mrb[0].mxu0 %v785
        %v876 = vpop.f32.mrb[0].mxu0
        %v877 = vadd.f32 %v779, %v876
        %v878 = vpop.f32.mrb[0].mxu0
        %879 = vmatprep.mubr.f32.mxu0 0.0
        %880 = vmatmul.mubr.f32.gmra.mrb[0].mxu0 %v788
        %v881 = vpop.f32.mrb[0].mxu0
        %v882 = vadd.f32 %v779, %v881
        %v883 = vpop.f32.mrb[0].mxu0
        %884 = vmatprep.mubr.f32.mxu0 0.0
        %885 = vmatmul.mubr.f32.gmra.mrb[0].mxu0 %v791
        %v886 = vpop.f32.mrb[0].mxu0
        %v887 = vadd.f32 %v779, %v886
        %v888 = vpop.f32.mrb[0].mxu0
        %889 = vmatprep.mubr.f32.mxu0 0.0
        %890 = vmatmul.mubr.f32.gmra.mrb[0].mxu0 %v794
        %v891 = vpop.f32.mrb[0].mxu0
        %v892 = vadd.f32 %v779, %v891
        %v893 = vpop.f32.mrb[0].mxu0
        %894 = vmatprep.mubr.f32.mxu0 0.0
        %895 = vmatmul.mubr.f32.gmra.mrb[0].mxu0 %v797
        %v896 = vpop.f32.mrb[0].mxu0
        %v897 = vadd.f32 %v779, %v896
        %v898 = vpop.f32.mrb[0].mxu0
        %899 = vmatprep.mubr.f32.mxu0 0.0
        %900 = vmatmul.mubr.f32.gmra.mrb[0].mxu0 %v800
        %v901 = vpop.f32.mrb[0].mxu0
        %v902 = vadd.f32 %v779, %v901
        %v903 = vpop.f32.mrb[0].mxu0
        %904 = vmatprep.mubr.f32.mxu0 0.0
        %905 = vmatmul.mubr.f32.gmra.mrb[0].mxu0 %v803
        %v906 = vpop.f32.mrb[0].mxu0
        %v907 = vadd.f32 %v779, %v906
        %v908 = vpop.f32.mrb[0].mxu0
        %909 = vdwg.mxu0
        %v910 = vld [vmem:[%s587] sm:$0xff]
        %v911 = vld [vmem:[%s587 + $0x8] sm:$0xff]
        %v912 = vld [vmem:[%s587 + $0x10] sm:$0xff]
        %v913 = vld [vmem:[%s587 + $0x18] sm:$0xff]
        %v914 = vld [vmem:[%s590] sm:$0x1]
        %v916 = vlaneseq
        %v917 = vshrl.u32 %v916, 7
        %v918 = vsub.s32 0, %v917
        %v919 = vrot.slane %v914, %v918
        %v922 = vsel %vm632, %v613, 0
        %v925 = vsel %vm632, %v614, 0
        %v928 = vsel %vm632, %v615, 0
        %v931 = vsel %vm632, %v616, 0
        %v934 = vsel %vm632, %v617, 0
        %v937 = vsel %vm632, %v618, 0
        %v940 = vsel %vm632, %v619, 0
        %v943 = vsel %vm632, %v620, 0
        %945 = vmatprep.subr.mxu0 0.0
        %946 = vmatpush1.msra.mxu0 %v910
        %947 = vmatprep.subr.mxu0 0.0
        %948 = vmatpush1.msra.mxu0 %v911
        %949 = vmatprep.subr.mxu0 0.0
        %950 = vmatpush1.msra.mxu0 %v912
        %951 = vmatprep.subr.mxu0 0.0
        %952 = vmatpush1.msra.mxu0 %v913
        %953 = vmatprep.subr.mxu0 0.0
        %954 = vmatpush1.msra.mxu0 0.0
        %955 = vmatprep.subr.mxu0 0.0
        %956 = vmatpush1.msra.mxu0 0.0
        %957 = vmatprep.subr.mxu0 0.0
        %958 = vmatpush1.msra.mxu0 0.0
        %959 = vmatprep.subr.mxu0 0.0
        %960 = vmatpush1.msra.mxu0 0.0
        %961 = vmatprep.subr.mxu0 0.0
        %962 = vmatpush1.msra.mxu0 0.0
        %963 = vmatprep.subr.mxu0 0.0
        %964 = vmatpush1.msra.mxu0 0.0
        %965 = vmatprep.subr.mxu0 0.0
        %966 = vmatpush1.msra.mxu0 0.0
        %967 = vmatprep.subr.mxu0 0.0
        %968 = vmatpush1.msra.mxu0 0.0
        %969 = vmatprep.subr.mxu0 0.0
        %970 = vmatpush1.msra.mxu0 0.0
        %971 = vmatprep.subr.mxu0 0.0
        %972 = vmatpush1.msra.mxu0 0.0
        %973 = vmatprep.subr.mxu0 0.0
        %974 = vmatpush1.msra.mxu0 0.0
        %975 = vmatprep.subr.mxu0 0.0
        %976 = vmatpush1.msra.mxu0 0.0
        %977 = vmatprep.subr.mxu0 0.0
        %978 = vmatpush1.msra.mxu0 0.0
        %979 = vmatprep.subr.mxu0 0.0
        %980 = vmatpush1.msra.mxu0 0.0
        %981 = vmatprep.subr.mxu0 0.0
        %982 = vmatpush1.msra.mxu0 0.0
        %983 = vmatprep.subr.mxu0 0.0
        %984 = vmatpush1.msra.mxu0 0.0
        %985 = vmatprep.subr.mxu0 0.0
        %986 = vmatpush1.msra.mxu0 0.0
        %987 = vmatprep.subr.mxu0 0.0
        %988 = vmatpush1.msra.mxu0 0.0
        %989 = vmatprep.subr.mxu0 0.0
        %990 = vmatpush1.msra.mxu0 0.0
        %991 = vmatprep.subr.mxu0 0.0
        %992 = vmatpush1.msra.mxu0 0.0
        %993 = vmatprep.subr.mxu0 0.0
        %994 = vmatpush1.msra.mxu0 0.0
        %995 = vmatprep.subr.mxu0 0.0
        %996 = vmatpush1.msra.mxu0 0.0
        %997 = vmatprep.subr.mxu0 0.0
        %998 = vmatpush1.msra.mxu0 0.0
        %999 = vmatprep.subr.mxu0 0.0
        %1000 = vmatpush1.msra.mxu0 0.0
        %1001 = vmatprep.subr.mxu0 0.0
        %1002 = vmatpush1.msra.mxu0 0.0
        %1003 = vmatprep.subr.mxu0 0.0
        %1004 = vmatpush1.msra.mxu0 0.0
        %1005 = vmatprep.subr.mxu0 0.0
        %1006 = vmatpush1.msra.mxu0 0.0
        %1007 = vmatprep.subr.mxu0 0.0
        %1008 = vmatpush1.msra.mxu0 0.0
        %1009 = vmatprep.mubr.f32.mxu0 0.0
        %1010 = vmatmul.mubr.f32.gmra.mrb[0].mxu0 %v922
        %v1011 = vpop.f32.mrb[0].mxu0
        %v1012 = vadd.f32 %v919, %v1011
        %v1013 = vpop.f32.mrb[0].mxu0
        %1014 = vmatprep.mubr.f32.mxu0 0.0
        %1015 = vmatmul.mubr.f32.gmra.mrb[0].mxu0 %v925
        %v1016 = vpop.f32.mrb[0].mxu0
        %v1017 = vadd.f32 %v919, %v1016
        %v1018 = vpop.f32.mrb[0].mxu0
        %1019 = vmatprep.mubr.f32.mxu0 0.0
        %1020 = vmatmul.mubr.f32.gmra.mrb[0].mxu0 %v928
        %v1021 = vpop.f32.mrb[0].mxu0
        %v1022 = vadd.f32 %v919, %v1021
        %v1023 = vpop.f32.mrb[0].mxu0
        %1024 = vmatprep.mubr.f32.mxu0 0.0
        %1025 = vmatmul.mubr.f32.gmra.mrb[0].mxu0 %v931
        %v1026 = vpop.f32.mrb[0].mxu0
        %v1027 = vadd.f32 %v919, %v1026
        %v1028 = vpop.f32.mrb[0].mxu0
        %1029 = vmatprep.mubr.f32.mxu0 0.0
        %1030 = vmatmul.mubr.f32.gmra.mrb[0].mxu0 %v934
        %v1031 = vpop.f32.mrb[0].mxu0
        %v1032 = vadd.f32 %v919, %v1031
        %v1033 = vpop.f32.mrb[0].mxu0
        %1034 = vmatprep.mubr.f32.mxu0 0.0
        %1035 = vmatmul.mubr.f32.gmra.mrb[0].mxu0 %v937
        %v1036 = vpop.f32.mrb[0].mxu0
        %v1037 = vadd.f32 %v919, %v1036
        %v1038 = vpop.f32.mrb[0].mxu0
        %1039 = vmatprep.mubr.f32.mxu0 0.0
        %1040 = vmatmul.mubr.f32.gmra.mrb[0].mxu0 %v940
        %v1041 = vpop.f32.mrb[0].mxu0
        %v1042 = vadd.f32 %v919, %v1041
        %v1043 = vpop.f32.mrb[0].mxu0
        %1044 = vmatprep.mubr.f32.mxu0 0.0
        %1045 = vmatmul.mubr.f32.gmra.mrb[0].mxu0 %v943
        %v1046 = vpop.f32.mrb[0].mxu0
        %v1047 = vadd.f32 %v919, %v1046
        %v1048 = vpop.f32.mrb[0].mxu0
        %1049 = vdwg.mxu0
        %vm1050 = vcmask 64512
        %v1052 = vsel %vm1050, %v762, 0
        %v1055 = vsel %vm1050, %v872, 0
        %1057 = vmatprep.subr.mxu0 0.0
        %1058 = vmatpush1.xpose.msra.mxu0 %v1055
        %1059 = vmatprep.subr.mxu0 0.0
        %1060 = vmatpush1.xpose.msra.mxu0 0.0
        %1061 = vmatprep.subr.mxu0 0.0
        %1062 = vmatpush1.xpose.msra.mxu0 0.0
        %1063 = vmatprep.subr.mxu0 0.0
        %1064 = vmatpush1.xpose.msra.mxu0 0.0
        %1065 = vmatprep.subr.mxu0 0.0
        %1066 = vmatpush1.xpose.msra.mxu0 0.0
        %1067 = vmatprep.subr.mxu0 0.0
        %1068 = vmatpush1.xpose.msra.mxu0 0.0
        %1069 = vmatprep.subr.mxu0 0.0
        %1070 = vmatpush1.xpose.msra.mxu0 0.0
        %1071 = vmatprep.subr.mxu0 0.0
        %1072 = vmatpush1.xpose.msra.mxu0 0.0
        %1073 = vmatprep.subr.mxu0 0.0
        %1074 = vmatpush1.xpose.msra.mxu0 0.0
        %1075 = vmatprep.subr.mxu0 0.0
        %1076 = vmatpush1.xpose.msra.mxu0 0.0
        %1077 = vmatprep.subr.mxu0 0.0
        %1078 = vmatpush1.xpose.msra.mxu0 0.0
        %1079 = vmatprep.subr.mxu0 0.0
        %1080 = vmatpush1.xpose.msra.mxu0 0.0
        %1081 = vmatprep.subr.mxu0 0.0
        %1082 = vmatpush1.xpose.msra.mxu0 0.0
        %1083 = vmatprep.subr.mxu0 0.0
        %1084 = vmatpush1.xpose.msra.mxu0 0.0
        %1085 = vmatprep.subr.mxu0 0.0
        %1086 = vmatpush1.xpose.msra.mxu0 0.0
        %1087 = vmatprep.subr.mxu0 0.0
        %1088 = vmatpush1.xpose.msra.mxu0 0.0
        %1089 = vmatprep.subr.mxu0 0.0
        %1090 = vmatpush1.xpose.msra.mxu0 0.0
        %1091 = vmatprep.subr.mxu0 0.0
        %1092 = vmatpush1.xpose.msra.mxu0 0.0
        %1093 = vmatprep.subr.mxu0 0.0
        %1094 = vmatpush1.xpose.msra.mxu0 0.0
        %1095 = vmatprep.subr.mxu0 0.0
        %1096 = vmatpush1.xpose.msra.mxu0 0.0
        %1097 = vmatprep.subr.mxu0 0.0
        %1098 = vmatpush1.xpose.msra.mxu0 0.0
        %1099 = vmatprep.subr.mxu0 0.0
        %1100 = vmatpush1.xpose.msra.mxu0 0.0
        %1101 = vmatprep.subr.mxu0 0.0
        %1102 = vmatpush1.xpose.msra.mxu0 0.0
        %1103 = vmatprep.subr.mxu0 0.0
        %1104 = vmatpush1.xpose.msra.mxu0 0.0
        %1105 = vmatprep.subr.mxu0 0.0
        %1106 = vmatpush1.xpose.msra.mxu0 0.0
        %1107 = vmatprep.subr.mxu0 0.0
        %1108 = vmatpush1.xpose.msra.mxu0 0.0
        %1109 = vmatprep.subr.mxu0 0.0
        %1110 = vmatpush1.xpose.msra.mxu0 0.0
        %1111 = vmatprep.subr.mxu0 0.0
        %1112 = vmatpush1.xpose.msra.mxu0 0.0
        %1113 = vmatprep.subr.mxu0 0.0
        %1114 = vmatpush1.xpose.msra.mxu0 0.0
        %1115 = vmatprep.subr.mxu0 0.0
        %1116 = vmatpush1.xpose.msra.mxu0 0.0
        %1117 = vmatprep.subr.mxu0 0.0
        %1118 = vmatpush1.xpose.msra.mxu0 0.0
        %1119 = vmatprep.subr.mxu0 0.0
        %1120 = vmatpush1.xpose.msra.mxu0 0.0
        %1121 = vmatprep.mubr.f32.mxu0 0.0
        %1122 = vmatmul.mubr.f32.gmra.mrb[0].mxu0 %v1052
        %v1123 = vpop.f32.mrb[0].mxu0
        %v1124 = vadd.f32 0.0, %v1123
        %v1125 = vpop.f32.mrb[0].mxu0
        %1126 = vdwg.mxu0
        %v1128 = vsel %vm1050, %v763, 0
        %v1131 = vsel %vm1050, %v877, 0
        %1133 = vmatprep.subr.mxu0 0.0
        %1134 = vmatpush1.xpose.msra.mxu0 %v1131
        %1135 = vmatprep.subr.mxu0 0.0
        %1136 = vmatpush1.xpose.msra.mxu0 0.0
        %1137 = vmatprep.subr.mxu0 0.0
        %1138 = vmatpush1.xpose.msra.mxu0 0.0
        %1139 = vmatprep.subr.mxu0 0.0
        %1140 = vmatpush1.xpose.msra.mxu0 0.0
        %1141 = vmatprep.subr.mxu0 0.0
        %1142 = vmatpush1.xpose.msra.mxu0 0.0
        %1143 = vmatprep.subr.mxu0 0.0
        %1144 = vmatpush1.xpose.msra.mxu0 0.0
        %1145 = vmatprep.subr.mxu0 0.0
        %1146 = vmatpush1.xpose.msra.mxu0 0.0
        %1147 = vmatprep.subr.mxu0 0.0
        %1148 = vmatpush1.xpose.msra.mxu0 0.0
        %1149 = vmatprep.subr.mxu0 0.0
        %1150 = vmatpush1.xpose.msra.mxu0 0.0
        %1151 = vmatprep.subr.mxu0 0.0
        %1152 = vmatpush1.xpose.msra.mxu0 0.0
        %1153 = vmatprep.subr.mxu0 0.0
        %1154 = vmatpush1.xpose.msra.mxu0 0.0
        %1155 = vmatprep.subr.mxu0 0.0
        %1156 = vmatpush1.xpose.msra.mxu0 0.0
        %1157 = vmatprep.subr.mxu0 0.0
        %1158 = vmatpush1.xpose.msra.mxu0 0.0
        %1159 = vmatprep.subr.mxu0 0.0
        %1160 = vmatpush1.xpose.msra.mxu0 0.0
        %1161 = vmatprep.subr.mxu0 0.0
        %1162 = vmatpush1.xpose.msra.mxu0 0.0
        %1163 = vmatprep.subr.mxu0 0.0
        %1164 = vmatpush1.xpose.msra.mxu0 0.0
        %1165 = vmatprep.subr.mxu0 0.0
        %1166 = vmatpush1.xpose.msra.mxu0 0.0
        %1167 = vmatprep.subr.mxu0 0.0
        %1168 = vmatpush1.xpose.msra.mxu0 0.0
        %1169 = vmatprep.subr.mxu0 0.0
        %1170 = vmatpush1.xpose.msra.mxu0 0.0
        %1171 = vmatprep.subr.mxu0 0.0
        %1172 = vmatpush1.xpose.msra.mxu0 0.0
        %1173 = vmatprep.subr.mxu0 0.0
        %1174 = vmatpush1.xpose.msra.mxu0 0.0
        %1175 = vmatprep.subr.mxu0 0.0
        %1176 = vmatpush1.xpose.msra.mxu0 0.0
        %1177 = vmatprep.subr.mxu0 0.0
        %1178 = vmatpush1.xpose.msra.mxu0 0.0
        %1179 = vmatprep.subr.mxu0 0.0
        %1180 = vmatpush1.xpose.msra.mxu0 0.0
        %1181 = vmatprep.subr.mxu0 0.0
        %1182 = vmatpush1.xpose.msra.mxu0 0.0
        %1183 = vmatprep.subr.mxu0 0.0
        %1184 = vmatpush1.xpose.msra.mxu0 0.0
        %1185 = vmatprep.subr.mxu0 0.0
        %1186 = vmatpush1.xpose.msra.mxu0 0.0
        %1187 = vmatprep.subr.mxu0 0.0
        %1188 = vmatpush1.xpose.msra.mxu0 0.0
        %1189 = vmatprep.subr.mxu0 0.0
        %1190 = vmatpush1.xpose.msra.mxu0 0.0
        %1191 = vmatprep.subr.mxu0 0.0
        %1192 = vmatpush1.xpose.msra.mxu0 0.0
        %1193 = vmatprep.subr.mxu0 0.0
        %1194 = vmatpush1.xpose.msra.mxu0 0.0
        %1195 = vmatprep.subr.mxu0 0.0
        %1196 = vmatpush1.xpose.msra.mxu0 0.0
        %1197 = vmatprep.mubr.f32.mxu0 0.0
        %1198 = vmatmul.mubr.f32.gmra.mrb[0].mxu0 %v1128
        %v1199 = vpop.f32.mrb[0].mxu0
        %v1200 = vadd.f32 0.0, %v1199
        %v1201 = vpop.f32.mrb[0].mxu0
        %1202 = vdwg.mxu0
        %v1204 = vsel %vm1050, %v764, 0
        %v1207 = vsel %vm1050, %v882, 0
        %1209 = vmatprep.subr.mxu0 0.0
        %1210 = vmatpush1.xpose.msra.mxu0 %v1207
        %1211 = vmatprep.subr.mxu0 0.0
        %1212 = vmatpush1.xpose.msra.mxu0 0.0
        %1213 = vmatprep.subr.mxu0 0.0
        %1214 = vmatpush1.xpose.msra.mxu0 0.0
        %1215 = vmatprep.subr.mxu0 0.0
        %1216 = vmatpush1.xpose.msra.mxu0 0.0
        %1217 = vmatprep.subr.mxu0 0.0
        %1218 = vmatpush1.xpose.msra.mxu0 0.0
        %1219 = vmatprep.subr.mxu0 0.0
        %1220 = vmatpush1.xpose.msra.mxu0 0.0
        %1221 = vmatprep.subr.mxu0 0.0
        %1222 = vmatpush1.xpose.msra.mxu0 0.0
        %1223 = vmatprep.subr.mxu0 0.0
        %1224 = vmatpush1.xpose.msra.mxu0 0.0
        %1225 = vmatprep.subr.mxu0 0.0
        %1226 = vmatpush1.xpose.msra.mxu0 0.0
        %1227 = vmatprep.subr.mxu0 0.0
        %1228 = vmatpush1.xpose.msra.mxu0 0.0
        %1229 = vmatprep.subr.mxu0 0.0
        %1230 = vmatpush1.xpose.msra.mxu0 0.0
        %1231 = vmatprep.subr.mxu0 0.0
        %1232 = vmatpush1.xpose.msra.mxu0 0.0
        %1233 = vmatprep.subr.mxu0 0.0
        %1234 = vmatpush1.xpose.msra.mxu0 0.0
        %1235 = vmatprep.subr.mxu0 0.0
        %1236 = vmatpush1.xpose.msra.mxu0 0.0
        %1237 = vmatprep.subr.mxu0 0.0
        %1238 = vmatpush1.xpose.msra.mxu0 0.0
        %1239 = vmatprep.subr.mxu0 0.0
        %1240 = vmatpush1.xpose.msra.mxu0 0.0
        %1241 = vmatprep.subr.mxu0 0.0
        %1242 = vmatpush1.xpose.msra.mxu0 0.0
        %1243 = vmatprep.subr.mxu0 0.0
        %1244 = vmatpush1.xpose.msra.mxu0 0.0
        %1245 = vmatprep.subr.mxu0 0.0
        %1246 = vmatpush1.xpose.msra.mxu0 0.0
        %1247 = vmatprep.subr.mxu0 0.0
        %1248 = vmatpush1.xpose.msra.mxu0 0.0
        %1249 = vmatprep.subr.mxu0 0.0
        %1250 = vmatpush1.xpose.msra.mxu0 0.0
        %1251 = vmatprep.subr.mxu0 0.0
        %1252 = vmatpush1.xpose.msra.mxu0 0.0
        %1253 = vmatprep.subr.mxu0 0.0
        %1254 = vmatpush1.xpose.msra.mxu0 0.0
        %1255 = vmatprep.subr.mxu0 0.0
        %1256 = vmatpush1.xpose.msra.mxu0 0.0
        %1257 = vmatprep.subr.mxu0 0.0
        %1258 = vmatpush1.xpose.msra.mxu0 0.0
        %1259 = vmatprep.subr.mxu0 0.0
        %1260 = vmatpush1.xpose.msra.mxu0 0.0
        %1261 = vmatprep.subr.mxu0 0.0
        %1262 = vmatpush1.xpose.msra.mxu0 0.0
        %1263 = vmatprep.subr.mxu0 0.0
        %1264 = vmatpush1.xpose.msra.mxu0 0.0
        %1265 = vmatprep.subr.mxu0 0.0
        %1266 = vmatpush1.xpose.msra.mxu0 0.0
        %1267 = vmatprep.subr.mxu0 0.0
        %1268 = vmatpush1.xpose.msra.mxu0 0.0
        %1269 = vmatprep.subr.mxu0 0.0
        %1270 = vmatpush1.xpose.msra.mxu0 0.0
        %1271 = vmatprep.subr.mxu0 0.0
        %1272 = vmatpush1.xpose.msra.mxu0 0.0
        %1273 = vmatprep.mubr.f32.mxu0 0.0
        %1274 = vmatmul.mubr.f32.gmra.mrb[0].mxu0 %v1204
        %v1275 = vpop.f32.mrb[0].mxu0
        %v1276 = vadd.f32 0.0, %v1275
        %v1277 = vpop.f32.mrb[0].mxu0
        %1278 = vdwg.mxu0
        %v1280 = vsel %vm1050, %v765, 0
        %v1283 = vsel %vm1050, %v887, 0
        %1285 = vmatprep.subr.mxu0 0.0
        %1286 = vmatpush1.xpose.msra.mxu0 %v1283
        %1287 = vmatprep.subr.mxu0 0.0
        %1288 = vmatpush1.xpose.msra.mxu0 0.0
        %1289 = vmatprep.subr.mxu0 0.0
        %1290 = vmatpush1.xpose.msra.mxu0 0.0
        %1291 = vmatprep.subr.mxu0 0.0
        %1292 = vmatpush1.xpose.msra.mxu0 0.0
        %1293 = vmatprep.subr.mxu0 0.0
        %1294 = vmatpush1.xpose.msra.mxu0 0.0
        %1295 = vmatprep.subr.mxu0 0.0
        %1296 = vmatpush1.xpose.msra.mxu0 0.0
        %1297 = vmatprep.subr.mxu0 0.0
        %1298 = vmatpush1.xpose.msra.mxu0 0.0
        %1299 = vmatprep.subr.mxu0 0.0
        %1300 = vmatpush1.xpose.msra.mxu0 0.0
        %1301 = vmatprep.subr.mxu0 0.0
        %1302 = vmatpush1.xpose.msra.mxu0 0.0
        %1303 = vmatprep.subr.mxu0 0.0
        %1304 = vmatpush1.xpose.msra.mxu0 0.0
        %1305 = vmatprep.subr.mxu0 0.0
        %1306 = vmatpush1.xpose.msra.mxu0 0.0
        %1307 = vmatprep.subr.mxu0 0.0
        %1308 = vmatpush1.xpose.msra.mxu0 0.0
        %1309 = vmatprep.subr.mxu0 0.0
        %1310 = vmatpush1.xpose.msra.mxu0 0.0
        %1311 = vmatprep.subr.mxu0 0.0
        %1312 = vmatpush1.xpose.msra.mxu0 0.0
        %1313 = vmatprep.subr.mxu0 0.0
        %1314 = vmatpush1.xpose.msra.mxu0 0.0
        %1315 = vmatprep.subr.mxu0 0.0
        %1316 = vmatpush1.xpose.msra.mxu0 0.0
        %1317 = vmatprep.subr.mxu0 0.0
        %1318 = vmatpush1.xpose.msra.mxu0 0.0
        %1319 = vmatprep.subr.mxu0 0.0
        %1320 = vmatpush1.xpose.msra.mxu0 0.0
        %1321 = vmatprep.subr.mxu0 0.0
        %1322 = vmatpush1.xpose.msra.mxu0 0.0
        %1323 = vmatprep.subr.mxu0 0.0
        %1324 = vmatpush1.xpose.msra.mxu0 0.0
        %1325 = vmatprep.subr.mxu0 0.0
        %1326 = vmatpush1.xpose.msra.mxu0 0.0
        %1327 = vmatprep.subr.mxu0 0.0
        %1328 = vmatpush1.xpose.msra.mxu0 0.0
        %1329 = vmatprep.subr.mxu0 0.0
        %1330 = vmatpush1.xpose.msra.mxu0 0.0
        %1331 = vmatprep.subr.mxu0 0.0
        %1332 = vmatpush1.xpose.msra.mxu0 0.0
        %1333 = vmatprep.subr.mxu0 0.0
        %1334 = vmatpush1.xpose.msra.mxu0 0.0
        %1335 = vmatprep.subr.mxu0 0.0
        %1336 = vmatpush1.xpose.msra.mxu0 0.0
        %1337 = vmatprep.subr.mxu0 0.0
        %1338 = vmatpush1.xpose.msra.mxu0 0.0
        %1339 = vmatprep.subr.mxu0 0.0
        %1340 = vmatpush1.xpose.msra.mxu0 0.0
        %1341 = vmatprep.subr.mxu0 0.0
        %1342 = vmatpush1.xpose.msra.mxu0 0.0
        %1343 = vmatprep.subr.mxu0 0.0
        %1344 = vmatpush1.xpose.msra.mxu0 0.0
        %1345 = vmatprep.subr.mxu0 0.0
        %1346 = vmatpush1.xpose.msra.mxu0 0.0
        %1347 = vmatprep.subr.mxu0 0.0
        %1348 = vmatpush1.xpose.msra.mxu0 0.0
        %1349 = vmatprep.mubr.f32.mxu0 0.0
        %1350 = vmatmul.mubr.f32.gmra.mrb[0].mxu0 %v1280
        %v1351 = vpop.f32.mrb[0].mxu0
        %v1352 = vadd.f32 0.0, %v1351
        %v1353 = vpop.f32.mrb[0].mxu0
        %1354 = vdwg.mxu0
        %v1356 = vsel %vm1050, %v766, 0
        %v1359 = vsel %vm1050, %v892, 0
        %1361 = vmatprep.subr.mxu0 0.0
        %1362 = vmatpush1.xpose.msra.mxu0 %v1359
        %1363 = vmatprep.subr.mxu0 0.0
        %1364 = vmatpush1.xpose.msra.mxu0 0.0
        %1365 = vmatprep.subr.mxu0 0.0
        %1366 = vmatpush1.xpose.msra.mxu0 0.0
        %1367 = vmatprep.subr.mxu0 0.0
        %1368 = vmatpush1.xpose.msra.mxu0 0.0
        %1369 = vmatprep.subr.mxu0 0.0
        %1370 = vmatpush1.xpose.msra.mxu0 0.0
        %1371 = vmatprep.subr.mxu0 0.0
        %1372 = vmatpush1.xpose.msra.mxu0 0.0
        %1373 = vmatprep.subr.mxu0 0.0
        %1374 = vmatpush1.xpose.msra.mxu0 0.0
        %1375 = vmatprep.subr.mxu0 0.0
        %1376 = vmatpush1.xpose.msra.mxu0 0.0
        %1377 = vmatprep.subr.mxu0 0.0
        %1378 = vmatpush1.xpose.msra.mxu0 0.0
        %1379 = vmatprep.subr.mxu0 0.0
        %1380 = vmatpush1.xpose.msra.mxu0 0.0
        %1381 = vmatprep.subr.mxu0 0.0
        %1382 = vmatpush1.xpose.msra.mxu0 0.0
        %1383 = vmatprep.subr.mxu0 0.0
        %1384 = vmatpush1.xpose.msra.mxu0 0.0
        %1385 = vmatprep.subr.mxu0 0.0
        %1386 = vmatpush1.xpose.msra.mxu0 0.0
        %1387 = vmatprep.subr.mxu0 0.0
        %1388 = vmatpush1.xpose.msra.mxu0 0.0
        %1389 = vmatprep.subr.mxu0 0.0
        %1390 = vmatpush1.xpose.msra.mxu0 0.0
        %1391 = vmatprep.subr.mxu0 0.0
        %1392 = vmatpush1.xpose.msra.mxu0 0.0
        %1393 = vmatprep.subr.mxu0 0.0
        %1394 = vmatpush1.xpose.msra.mxu0 0.0
        %1395 = vmatprep.subr.mxu0 0.0
        %1396 = vmatpush1.xpose.msra.mxu0 0.0
        %1397 = vmatprep.subr.mxu0 0.0
        %1398 = vmatpush1.xpose.msra.mxu0 0.0
        %1399 = vmatprep.subr.mxu0 0.0
        %1400 = vmatpush1.xpose.msra.mxu0 0.0
        %1401 = vmatprep.subr.mxu0 0.0
        %1402 = vmatpush1.xpose.msra.mxu0 0.0
        %1403 = vmatprep.subr.mxu0 0.0
        %1404 = vmatpush1.xpose.msra.mxu0 0.0
        %1405 = vmatprep.subr.mxu0 0.0
        %1406 = vmatpush1.xpose.msra.mxu0 0.0
        %1407 = vmatprep.subr.mxu0 0.0
        %1408 = vmatpush1.xpose.msra.mxu0 0.0
        %1409 = vmatprep.subr.mxu0 0.0
        %1410 = vmatpush1.xpose.msra.mxu0 0.0
        %1411 = vmatprep.subr.mxu0 0.0
        %1412 = vmatpush1.xpose.msra.mxu0 0.0
        %1413 = vmatprep.subr.mxu0 0.0
        %1414 = vmatpush1.xpose.msra.mxu0 0.0
        %1415 = vmatprep.subr.mxu0 0.0
        %1416 = vmatpush1.xpose.msra.mxu0 0.0
        %1417 = vmatprep.subr.mxu0 0.0
        %1418 = vmatpush1.xpose.msra.mxu0 0.0
        %1419 = vmatprep.subr.mxu0 0.0
        %1420 = vmatpush1.xpose.msra.mxu0 0.0
        %1421 = vmatprep.subr.mxu0 0.0
        %1422 = vmatpush1.xpose.msra.mxu0 0.0
        %1423 = vmatprep.subr.mxu0 0.0
        %1424 = vmatpush1.xpose.msra.mxu0 0.0
        %1425 = vmatprep.mubr.f32.mxu0 0.0
        %1426 = vmatmul.mubr.f32.gmra.mrb[0].mxu0 %v1356
        %v1427 = vpop.f32.mrb[0].mxu0
        %v1428 = vadd.f32 0.0, %v1427
        %v1429 = vpop.f32.mrb[0].mxu0
        %1430 = vdwg.mxu0
        %v1432 = vsel %vm1050, %v767, 0
        %v1435 = vsel %vm1050, %v897, 0
        %1437 = vmatprep.subr.mxu0 0.0
        %1438 = vmatpush1.xpose.msra.mxu0 %v1435
        %1439 = vmatprep.subr.mxu0 0.0
        %1440 = vmatpush1.xpose.msra.mxu0 0.0
        %1441 = vmatprep.subr.mxu0 0.0
        %1442 = vmatpush1.xpose.msra.mxu0 0.0
        %1443 = vmatprep.subr.mxu0 0.0
        %1444 = vmatpush1.xpose.msra.mxu0 0.0
        %1445 = vmatprep.subr.mxu0 0.0
        %1446 = vmatpush1.xpose.msra.mxu0 0.0
        %1447 = vmatprep.subr.mxu0 0.0
        %1448 = vmatpush1.xpose.msra.mxu0 0.0
        %1449 = vmatprep.subr.mxu0 0.0
        %1450 = vmatpush1.xpose.msra.mxu0 0.0
        %1451 = vmatprep.subr.mxu0 0.0
        %1452 = vmatpush1.xpose.msra.mxu0 0.0
        %1453 = vmatprep.subr.mxu0 0.0
        %1454 = vmatpush1.xpose.msra.mxu0 0.0
        %1455 = vmatprep.subr.mxu0 0.0
        %1456 = vmatpush1.xpose.msra.mxu0 0.0
        %1457 = vmatprep.subr.mxu0 0.0
        %1458 = vmatpush1.xpose.msra.mxu0 0.0
        %1459 = vmatprep.subr.mxu0 0.0
        %1460 = vmatpush1.xpose.msra.mxu0 0.0
        %1461 = vmatprep.subr.mxu0 0.0
        %1462 = vmatpush1.xpose.msra.mxu0 0.0
        %1463 = vmatprep.subr.mxu0 0.0
        %1464 = vmatpush1.xpose.msra.mxu0 0.0
        %1465 = vmatprep.subr.mxu0 0.0
        %1466 = vmatpush1.xpose.msra.mxu0 0.0
        %1467 = vmatprep.subr.mxu0 0.0
        %1468 = vmatpush1.xpose.msra.mxu0 0.0
        %1469 = vmatprep.subr.mxu0 0.0
        %1470 = vmatpush1.xpose.msra.mxu0 0.0
        %1471 = vmatprep.subr.mxu0 0.0
        %1472 = vmatpush1.xpose.msra.mxu0 0.0
        %1473 = vmatprep.subr.mxu0 0.0
        %1474 = vmatpush1.xpose.msra.mxu0 0.0
        %1475 = vmatprep.subr.mxu0 0.0
        %1476 = vmatpush1.xpose.msra.mxu0 0.0
        %1477 = vmatprep.subr.mxu0 0.0
        %1478 = vmatpush1.xpose.msra.mxu0 0.0
        %1479 = vmatprep.subr.mxu0 0.0
        %1480 = vmatpush1.xpose.msra.mxu0 0.0
        %1481 = vmatprep.subr.mxu0 0.0
        %1482 = vmatpush1.xpose.msra.mxu0 0.0
        %1483 = vmatprep.subr.mxu0 0.0
        %1484 = vmatpush1.xpose.msra.mxu0 0.0
        %1485 = vmatprep.subr.mxu0 0.0
        %1486 = vmatpush1.xpose.msra.mxu0 0.0
        %1487 = vmatprep.subr.mxu0 0.0
        %1488 = vmatpush1.xpose.msra.mxu0 0.0
        %1489 = vmatprep.subr.mxu0 0.0
        %1490 = vmatpush1.xpose.msra.mxu0 0.0
        %1491 = vmatprep.subr.mxu0 0.0
        %1492 = vmatpush1.xpose.msra.mxu0 0.0
        %1493 = vmatprep.subr.mxu0 0.0
        %1494 = vmatpush1.xpose.msra.mxu0 0.0
        %1495 = vmatprep.subr.mxu0 0.0
        %1496 = vmatpush1.xpose.msra.mxu0 0.0
        %1497 = vmatprep.subr.mxu0 0.0
        %1498 = vmatpush1.xpose.msra.mxu0 0.0
        %1499 = vmatprep.subr.mxu0 0.0
        %1500 = vmatpush1.xpose.msra.mxu0 0.0
        %1501 = vmatprep.mubr.f32.mxu0 0.0
        %1502 = vmatmul.mubr.f32.gmra.mrb[0].mxu0 %v1432
        %v1503 = vpop.f32.mrb[0].mxu0
        %v1504 = vadd.f32 0.0, %v1503
        %v1505 = vpop.f32.mrb[0].mxu0
        %1506 = vdwg.mxu0
        %v1508 = vsel %vm1050, %v768, 0
        %v1511 = vsel %vm1050, %v902, 0
        %1513 = vmatprep.subr.mxu0 0.0
        %1514 = vmatpush1.xpose.msra.mxu0 %v1511
        %1515 = vmatprep.subr.mxu0 0.0
        %1516 = vmatpush1.xpose.msra.mxu0 0.0
        %1517 = vmatprep.subr.mxu0 0.0
        %1518 = vmatpush1.xpose.msra.mxu0 0.0
        %1519 = vmatprep.subr.mxu0 0.0
        %1520 = vmatpush1.xpose.msra.mxu0 0.0
        %1521 = vmatprep.subr.mxu0 0.0
        %1522 = vmatpush1.xpose.msra.mxu0 0.0
        %1523 = vmatprep.subr.mxu0 0.0
        %1524 = vmatpush1.xpose.msra.mxu0 0.0
        %1525 = vmatprep.subr.mxu0 0.0
        %1526 = vmatpush1.xpose.msra.mxu0 0.0
        %1527 = vmatprep.subr.mxu0 0.0
        %1528 = vmatpush1.xpose.msra.mxu0 0.0
        %1529 = vmatprep.subr.mxu0 0.0
        %1530 = vmatpush1.xpose.msra.mxu0 0.0
        %1531 = vmatprep.subr.mxu0 0.0
        %1532 = vmatpush1.xpose.msra.mxu0 0.0
        %1533 = vmatprep.subr.mxu0 0.0
        %1534 = vmatpush1.xpose.msra.mxu0 0.0
        %1535 = vmatprep.subr.mxu0 0.0
        %1536 = vmatpush1.xpose.msra.mxu0 0.0
        %1537 = vmatprep.subr.mxu0 0.0
        %1538 = vmatpush1.xpose.msra.mxu0 0.0
        %1539 = vmatprep.subr.mxu0 0.0
        %1540 = vmatpush1.xpose.msra.mxu0 0.0
        %1541 = vmatprep.subr.mxu0 0.0
        %1542 = vmatpush1.xpose.msra.mxu0 0.0
        %1543 = vmatprep.subr.mxu0 0.0
        %1544 = vmatpush1.xpose.msra.mxu0 0.0
        %1545 = vmatprep.subr.mxu0 0.0
        %1546 = vmatpush1.xpose.msra.mxu0 0.0
        %1547 = vmatprep.subr.mxu0 0.0
        %1548 = vmatpush1.xpose.msra.mxu0 0.0
        %1549 = vmatprep.subr.mxu0 0.0
        %1550 = vmatpush1.xpose.msra.mxu0 0.0
        %1551 = vmatprep.subr.mxu0 0.0
        %1552 = vmatpush1.xpose.msra.mxu0 0.0
        %1553 = vmatprep.subr.mxu0 0.0
        %1554 = vmatpush1.xpose.msra.mxu0 0.0
        %1555 = vmatprep.subr.mxu0 0.0
        %1556 = vmatpush1.xpose.msra.mxu0 0.0
        %1557 = vmatprep.subr.mxu0 0.0
        %1558 = vmatpush1.xpose.msra.mxu0 0.0
        %1559 = vmatprep.subr.mxu0 0.0
        %1560 = vmatpush1.xpose.msra.mxu0 0.0
        %1561 = vmatprep.subr.mxu0 0.0
        %1562 = vmatpush1.xpose.msra.mxu0 0.0
        %1563 = vmatprep.subr.mxu0 0.0
        %1564 = vmatpush1.xpose.msra.mxu0 0.0
        %1565 = vmatprep.subr.mxu0 0.0
        %1566 = vmatpush1.xpose.msra.mxu0 0.0
        %1567 = vmatprep.subr.mxu0 0.0
        %1568 = vmatpush1.xpose.msra.mxu0 0.0
        %1569 = vmatprep.subr.mxu0 0.0
        %1570 = vmatpush1.xpose.msra.mxu0 0.0
        %1571 = vmatprep.subr.mxu0 0.0
        %1572 = vmatpush1.xpose.msra.mxu0 0.0
        %1573 = vmatprep.subr.mxu0 0.0
        %1574 = vmatpush1.xpose.msra.mxu0 0.0
        %1575 = vmatprep.subr.mxu0 0.0
        %1576 = vmatpush1.xpose.msra.mxu0 0.0
        %1577 = vmatprep.mubr.f32.mxu0 0.0
        %1578 = vmatmul.mubr.f32.gmra.mrb[0].mxu0 %v1508
        %v1579 = vpop.f32.mrb[0].mxu0
        %v1580 = vadd.f32 0.0, %v1579
        %v1581 = vpop.f32.mrb[0].mxu0
        %1582 = vdwg.mxu0
        %v1584 = vsel %vm1050, %v769, 0
        %v1587 = vsel %vm1050, %v907, 0
        %1589 = vmatprep.subr.mxu0 0.0
        %1590 = vmatpush1.xpose.msra.mxu0 %v1587
        %1591 = vmatprep.subr.mxu0 0.0
        %1592 = vmatpush1.xpose.msra.mxu0 0.0
        %1593 = vmatprep.subr.mxu0 0.0
        %1594 = vmatpush1.xpose.msra.mxu0 0.0
        %1595 = vmatprep.subr.mxu0 0.0
        %1596 = vmatpush1.xpose.msra.mxu0 0.0
        %1597 = vmatprep.subr.mxu0 0.0
        %1598 = vmatpush1.xpose.msra.mxu0 0.0
        %1599 = vmatprep.subr.mxu0 0.0
        %1600 = vmatpush1.xpose.msra.mxu0 0.0
        %1601 = vmatprep.subr.mxu0 0.0
        %1602 = vmatpush1.xpose.msra.mxu0 0.0
        %1603 = vmatprep.subr.mxu0 0.0
        %1604 = vmatpush1.xpose.msra.mxu0 0.0
        %1605 = vmatprep.subr.mxu0 0.0
        %1606 = vmatpush1.xpose.msra.mxu0 0.0
        %1607 = vmatprep.subr.mxu0 0.0
        %1608 = vmatpush1.xpose.msra.mxu0 0.0
        %1609 = vmatprep.subr.mxu0 0.0
        %1610 = vmatpush1.xpose.msra.mxu0 0.0
        %1611 = vmatprep.subr.mxu0 0.0
        %1612 = vmatpush1.xpose.msra.mxu0 0.0
        %1613 = vmatprep.subr.mxu0 0.0
        %1614 = vmatpush1.xpose.msra.mxu0 0.0
        %1615 = vmatprep.subr.mxu0 0.0
        %1616 = vmatpush1.xpose.msra.mxu0 0.0
        %1617 = vmatprep.subr.mxu0 0.0
        %1618 = vmatpush1.xpose.msra.mxu0 0.0
        %1619 = vmatprep.subr.mxu0 0.0
        %1620 = vmatpush1.xpose.msra.mxu0 0.0
        %1621 = vmatprep.subr.mxu0 0.0
        %1622 = vmatpush1.xpose.msra.mxu0 0.0
        %1623 = vmatprep.subr.mxu0 0.0
        %1624 = vmatpush1.xpose.msra.mxu0 0.0
        %1625 = vmatprep.subr.mxu0 0.0
        %1626 = vmatpush1.xpose.msra.mxu0 0.0
        %1627 = vmatprep.subr.mxu0 0.0
        %1628 = vmatpush1.xpose.msra.mxu0 0.0
        %1629 = vmatprep.subr.mxu0 0.0
        %1630 = vmatpush1.xpose.msra.mxu0 0.0
        %1631 = vmatprep.subr.mxu0 0.0
        %1632 = vmatpush1.xpose.msra.mxu0 0.0
        %1633 = vmatprep.subr.mxu0 0.0
        %1634 = vmatpush1.xpose.msra.mxu0 0.0
        %1635 = vmatprep.subr.mxu0 0.0
        %1636 = vmatpush1.xpose.msra.mxu0 0.0
        %1637 = vmatprep.subr.mxu0 0.0
        %1638 = vmatpush1.xpose.msra.mxu0 0.0
        %1639 = vmatprep.subr.mxu0 0.0
        %1640 = vmatpush1.xpose.msra.mxu0 0.0
        %1641 = vmatprep.subr.mxu0 0.0
        %1642 = vmatpush1.xpose.msra.mxu0 0.0
        %1643 = vmatprep.subr.mxu0 0.0
        %1644 = vmatpush1.xpose.msra.mxu0 0.0
        %1645 = vmatprep.subr.mxu0 0.0
        %1646 = vmatpush1.xpose.msra.mxu0 0.0
        %1647 = vmatprep.subr.mxu0 0.0
        %1648 = vmatpush1.xpose.msra.mxu0 0.0
        %1649 = vmatprep.subr.mxu0 0.0
        %1650 = vmatpush1.xpose.msra.mxu0 0.0
        %1651 = vmatprep.subr.mxu0 0.0
        %1652 = vmatpush1.xpose.msra.mxu0 0.0
        %1653 = vmatprep.mubr.f32.mxu0 0.0
        %1654 = vmatmul.mubr.f32.gmra.mrb[0].mxu0 %v1584
        %v1655 = vpop.f32.mrb[0].mxu0
        %v1656 = vadd.f32 0.0, %v1655
        %v1657 = vpop.f32.mrb[0].mxu0
        %1658 = vdwg.mxu0
        %v1659 = vsel %vm1050, %v1124, -inf
        %1660 = vmax.xlane.f32.xlu0 %v1659
        %v1661 = vpop.xlane.xlu0 %1660
        %v1662 = vsel %vm1050, %v1200, -inf
        %1663 = vmax.xlane.f32.xlu0 %v1662
        %v1664 = vpop.xlane.xlu0 %1663
        %v1665 = vsel %vm1050, %v1276, -inf
        %1666 = vmax.xlane.f32.xlu0 %v1665
        %v1667 = vpop.xlane.xlu0 %1666
        %v1668 = vsel %vm1050, %v1352, -inf
        %1669 = vmax.xlane.f32.xlu0 %v1668
        %v1670 = vpop.xlane.xlu0 %1669
        %v1671 = vsel %vm1050, %v1428, -inf
        %1672 = vmax.xlane.f32.xlu0 %v1671
        %v1673 = vpop.xlane.xlu0 %1672
        %v1674 = vsel %vm1050, %v1504, -inf
        %1675 = vmax.xlane.f32.xlu0 %v1674
        %v1676 = vpop.xlane.xlu0 %1675
        %v1677 = vsel %vm1050, %v1580, -inf
        %1678 = vmax.xlane.f32.xlu0 %v1677
        %v1679 = vpop.xlane.xlu0 %1678
        %v1680 = vsel %vm1050, %v1656, -inf
        %1681 = vmax.xlane.f32.xlu0 %v1680
        %v1682 = vpop.xlane.xlu0 %1681
        %v1683 = vsub.f32 %v1124, %v1661
        %v1684 = vsub.f32 %v1200, %v1664
        %v1685 = vsub.f32 %v1276, %v1667
        %v1686 = vsub.f32 %v1352, %v1670
        %v1687 = vsub.f32 %v1428, %v1673
        %v1688 = vsub.f32 %v1504, %v1676
        %v1689 = vsub.f32 %v1580, %v1679
        %v1690 = vsub.f32 %v1656, %v1682
        %v1691 = vmul.f32 %v1683, 1.442695
        %v1692 = vpow.pop %v1691
        %v1693 = vmul.f32 %v1684, 1.442695
        %v1694 = vpow.pop %v1693
        %v1695 = vmul.f32 %v1685, 1.442695
        %v1696 = vpow.pop %v1695
        %v1697 = vmul.f32 %v1686, 1.442695
        %v1698 = vpow.pop %v1697
        %v1699 = vmul.f32 %v1687, 1.442695
        %v1700 = vpow.pop %v1699
        %v1701 = vmul.f32 %v1688, 1.442695
        %v1702 = vpow.pop %v1701
        %v1703 = vmul.f32 %v1689, 1.442695
        %v1704 = vpow.pop %v1703
        %v1705 = vmul.f32 %v1690, 1.442695
        %v1706 = vpow.pop %v1705
        %v1707 = vsel %vm1050, %v1692, 0.0
        %1708 = vadd.xlane.f32.xlu0 %v1707
        %v1709 = vpop.xlane.xlu0 %1708
        %v1710 = vsel %vm1050, %v1694, 0.0
        %1711 = vadd.xlane.f32.xlu0 %v1710
        %v1712 = vpop.xlane.xlu0 %1711
        %v1713 = vsel %vm1050, %v1696, 0.0
        %1714 = vadd.xlane.f32.xlu0 %v1713
        %v1715 = vpop.xlane.xlu0 %1714
        %v1716 = vsel %vm1050, %v1698, 0.0
        %1717 = vadd.xlane.f32.xlu0 %v1716
        %v1718 = vpop.xlane.xlu0 %1717
        %v1719 = vsel %vm1050, %v1700, 0.0
        %1720 = vadd.xlane.f32.xlu0 %v1719
        %v1721 = vpop.xlane.xlu0 %1720
        %v1722 = vsel %vm1050, %v1702, 0.0
        %1723 = vadd.xlane.f32.xlu0 %v1722
        %v1724 = vpop.xlane.xlu0 %1723
        %v1725 = vsel %vm1050, %v1704, 0.0
        %1726 = vadd.xlane.f32.xlu0 %v1725
        %v1727 = vpop.xlane.xlu0 %1726
        %v1728 = vsel %vm1050, %v1706, 0.0
        %1729 = vadd.xlane.f32.xlu0 %v1728
        %v1730 = vpop.xlane.xlu0 %1729
        %v1731 = vrcp.pop %v1709
        %v1732 = vrcp.pop %v1712
        %v1733 = vrcp.pop %v1715
        %v1734 = vrcp.pop %v1718
        %v1735 = vrcp.pop %v1721
        %v1736 = vrcp.pop %v1724
        %v1737 = vrcp.pop %v1727
        %v1738 = vrcp.pop %v1730
        %v1739 = vmul.f32 %v1692, %v1731
        %v1740 = vmul.f32 %v1694, %v1732
        %v1741 = vmul.f32 %v1696, %v1733
        %v1742 = vmul.f32 %v1698, %v1734
        %v1743 = vmul.f32 %v1700, %v1735
        %v1744 = vmul.f32 %v1702, %v1736
        %v1745 = vmul.f32 %v1704, %v1737
        %v1746 = vmul.f32 %v1706, %v1738
        %1747 = vst.msk [vmem:[%s548] sm:$0xff] %vm1050, %v1739
        %1748 = vst.msk [vmem:[%s548 + $0x8] sm:$0xff] %vm1050, %v1740
        %1749 = vst.msk [vmem:[%s548 + $0x10] sm:$0xff] %vm1050, %v1741
        %1750 = vst.msk [vmem:[%s548 + $0x18] sm:$0xff] %vm1050, %v1742
        %1751 = vst.msk [vmem:[%s548 + $0x20] sm:$0xff] %vm1050, %v1743
        %1752 = vst.msk [vmem:[%s548 + $0x28] sm:$0xff] %vm1050, %v1744
        %1753 = vst.msk [vmem:[%s548 + $0x30] sm:$0xff] %vm1050, %v1745
        %1754 = vst.msk [vmem:[%s548 + $0x38] sm:$0xff] %vm1050, %v1746
        %v1756 = vsel %vm1050, %v1739, 0
        %1758 = vmatprep.subr.mxu0 0.0
        %1759 = vmatpush1.msra.mxu0 %v1012
        %1760 = vmatprep.subr.mxu0 0.0
        %1761 = vmatpush1.msra.mxu0 0.0
        %1762 = vmatprep.subr.mxu0 0.0
        %1763 = vmatpush1.msra.mxu0 0.0
        %1764 = vmatprep.subr.mxu0 0.0
        %1765 = vmatpush1.msra.mxu0 0.0
        %1766 = vmatprep.subr.mxu0 0.0
        %1767 = vmatpush1.msra.mxu0 0.0
        %1768 = vmatprep.subr.mxu0 0.0
        %1769 = vmatpush1.msra.mxu0 0.0
        %1770 = vmatprep.subr.mxu0 0.0
        %1771 = vmatpush1.msra.mxu0 0.0
        %1772 = vmatprep.subr.mxu0 0.0
        %1773 = vmatpush1.msra.mxu0 0.0
        %1774 = vmatprep.subr.mxu0 0.0
        %1775 = vmatpush1.msra.mxu0 0.0
        %1776 = vmatprep.subr.mxu0 0.0
        %1777 = vmatpush1.msra.mxu0 0.0
        %1778 = vmatprep.subr.mxu0 0.0
        %1779 = vmatpush1.msra.mxu0 0.0
        %1780 = vmatprep.subr.mxu0 0.0
        %1781 = vmatpush1.msra.mxu0 0.0
        %1782 = vmatprep.subr.mxu0 0.0
        %1783 = vmatpush1.msra.mxu0 0.0
        %1784 = vmatprep.subr.mxu0 0.0
        %1785 = vmatpush1.msra.mxu0 0.0
        %1786 = vmatprep.subr.mxu0 0.0
        %1787 = vmatpush1.msra.mxu0 0.0
        %1788 = vmatprep.subr.mxu0 0.0
        %1789 = vmatpush1.msra.mxu0 0.0
        %1790 = vmatprep.subr.mxu0 0.0
        %1791 = vmatpush1.msra.mxu0 0.0
        %1792 = vmatprep.subr.mxu0 0.0
        %1793 = vmatpush1.msra.mxu0 0.0
        %1794 = vmatprep.subr.mxu0 0.0
        %1795 = vmatpush1.msra.mxu0 0.0
        %1796 = vmatprep.subr.mxu0 0.0
        %1797 = vmatpush1.msra.mxu0 0.0
        %1798 = vmatprep.subr.mxu0 0.0
        %1799 = vmatpush1.msra.mxu0 0.0
        %1800 = vmatprep.subr.mxu0 0.0
        %1801 = vmatpush1.msra.mxu0 0.0
        %1802 = vmatprep.subr.mxu0 0.0
        %1803 = vmatpush1.msra.mxu0 0.0
        %1804 = vmatprep.subr.mxu0 0.0
        %1805 = vmatpush1.msra.mxu0 0.0
        %1806 = vmatprep.subr.mxu0 0.0
        %1807 = vmatpush1.msra.mxu0 0.0
        %1808 = vmatprep.subr.mxu0 0.0
        %1809 = vmatpush1.msra.mxu0 0.0
        %1810 = vmatprep.subr.mxu0 0.0
        %1811 = vmatpush1.msra.mxu0 0.0
        %1812 = vmatprep.subr.mxu0 0.0
        %1813 = vmatpush1.msra.mxu0 0.0
        %1814 = vmatprep.subr.mxu0 0.0
        %1815 = vmatpush1.msra.mxu0 0.0
        %1816 = vmatprep.subr.mxu0 0.0
        %1817 = vmatpush1.msra.mxu0 0.0
        %1818 = vmatprep.subr.mxu0 0.0
        %1819 = vmatpush1.msra.mxu0 0.0
        %1820 = vmatprep.subr.mxu0 0.0
        %1821 = vmatpush1.msra.mxu0 0.0
        %1822 = vmatprep.mubr.f32.mxu0 0.0
        %1823 = vmatmul.mubr.f32.gmra.mrb[0].mxu0 %v1756
        %v1824 = vpop.f32.mrb[0].mxu0
        %v1825 = vadd.f32 0.0, %v1824
        %v1826 = vpop.f32.mrb[0].mxu0
        %1827 = vdwg.mxu0
        %v1829 = vsel %vm1050, %v1740, 0
        %1831 = vmatprep.subr.mxu0 0.0
        %1832 = vmatpush1.msra.mxu0 %v1017
        %1833 = vmatprep.subr.mxu0 0.0
        %1834 = vmatpush1.msra.mxu0 0.0
        %1835 = vmatprep.subr.mxu0 0.0
        %1836 = vmatpush1.msra.mxu0 0.0
        %1837 = vmatprep.subr.mxu0 0.0
        %1838 = vmatpush1.msra.mxu0 0.0
        %1839 = vmatprep.subr.mxu0 0.0
        %1840 = vmatpush1.msra.mxu0 0.0
        %1841 = vmatprep.subr.mxu0 0.0
        %1842 = vmatpush1.msra.mxu0 0.0
        %1843 = vmatprep.subr.mxu0 0.0
        %1844 = vmatpush1.msra.mxu0 0.0
        %1845 = vmatprep.subr.mxu0 0.0
        %1846 = vmatpush1.msra.mxu0 0.0
        %1847 = vmatprep.subr.mxu0 0.0
        %1848 = vmatpush1.msra.mxu0 0.0
        %1849 = vmatprep.subr.mxu0 0.0
        %1850 = vmatpush1.msra.mxu0 0.0
        %1851 = vmatprep.subr.mxu0 0.0
        %1852 = vmatpush1.msra.mxu0 0.0
        %1853 = vmatprep.subr.mxu0 0.0
        %1854 = vmatpush1.msra.mxu0 0.0
        %1855 = vmatprep.subr.mxu0 0.0
        %1856 = vmatpush1.msra.mxu0 0.0
        %1857 = vmatprep.subr.mxu0 0.0
        %1858 = vmatpush1.msra.mxu0 0.0
        %1859 = vmatprep.subr.mxu0 0.0
        %1860 = vmatpush1.msra.mxu0 0.0
        %1861 = vmatprep.subr.mxu0 0.0
        %1862 = vmatpush1.msra.mxu0 0.0
        %1863 = vmatprep.subr.mxu0 0.0
        %1864 = vmatpush1.msra.mxu0 0.0
        %1865 = vmatprep.subr.mxu0 0.0
        %1866 = vmatpush1.msra.mxu0 0.0
        %1867 = vmatprep.subr.mxu0 0.0
        %1868 = vmatpush1.msra.mxu0 0.0
        %1869 = vmatprep.subr.mxu0 0.0
        %1870 = vmatpush1.msra.mxu0 0.0
        %1871 = vmatprep.subr.mxu0 0.0
        %1872 = vmatpush1.msra.mxu0 0.0
        %1873 = vmatprep.subr.mxu0 0.0
        %1874 = vmatpush1.msra.mxu0 0.0
        %1875 = vmatprep.subr.mxu0 0.0
        %1876 = vmatpush1.msra.mxu0 0.0
        %1877 = vmatprep.subr.mxu0 0.0
        %1878 = vmatpush1.msra.mxu0 0.0
        %1879 = vmatprep.subr.mxu0 0.0
        %1880 = vmatpush1.msra.mxu0 0.0
        %1881 = vmatprep.subr.mxu0 0.0
        %1882 = vmatpush1.msra.mxu0 0.0
        %1883 = vmatprep.subr.mxu0 0.0
        %1884 = vmatpush1.msra.mxu0 0.0
        %1885 = vmatprep.subr.mxu0 0.0
        %1886 = vmatpush1.msra.mxu0 0.0
        %1887 = vmatprep.subr.mxu0 0.0
        %1888 = vmatpush1.msra.mxu0 0.0
        %1889 = vmatprep.subr.mxu0 0.0
        %1890 = vmatpush1.msra.mxu0 0.0
        %1891 = vmatprep.subr.mxu0 0.0
        %1892 = vmatpush1.msra.mxu0 0.0
        %1893 = vmatprep.subr.mxu0 0.0
        %1894 = vmatpush1.msra.mxu0 0.0
        %1895 = vmatprep.mubr.f32.mxu0 0.0
        %1896 = vmatmul.mubr.f32.gmra.mrb[0].mxu0 %v1829
        %v1897 = vpop.f32.mrb[0].mxu0
        %v1898 = vadd.f32 0.0, %v1897
        %v1899 = vpop.f32.mrb[0].mxu0
        %1900 = vdwg.mxu0
        %v1902 = vsel %vm1050, %v1741, 0
        %1904 = vmatprep.subr.mxu0 0.0
        %1905 = vmatpush1.msra.mxu0 %v1022
        %1906 = vmatprep.subr.mxu0 0.0
        %1907 = vmatpush1.msra.mxu0 0.0
        %1908 = vmatprep.subr.mxu0 0.0
        %1909 = vmatpush1.msra.mxu0 0.0
        %1910 = vmatprep.subr.mxu0 0.0
        %1911 = vmatpush1.msra.mxu0 0.0
        %1912 = vmatprep.subr.mxu0 0.0
        %1913 = vmatpush1.msra.mxu0 0.0
        %1914 = vmatprep.subr.mxu0 0.0
        %1915 = vmatpush1.msra.mxu0 0.0
        %1916 = vmatprep.subr.mxu0 0.0
        %1917 = vmatpush1.msra.mxu0 0.0
        %1918 = vmatprep.subr.mxu0 0.0
        %1919 = vmatpush1.msra.mxu0 0.0
        %1920 = vmatprep.subr.mxu0 0.0
        %1921 = vmatpush1.msra.mxu0 0.0
        %1922 = vmatprep.subr.mxu0 0.0
        %1923 = vmatpush1.msra.mxu0 0.0
        %1924 = vmatprep.subr.mxu0 0.0
        %1925 = vmatpush1.msra.mxu0 0.0
        %1926 = vmatprep.subr.mxu0 0.0
        %1927 = vmatpush1.msra.mxu0 0.0
        %1928 = vmatprep.subr.mxu0 0.0
        %1929 = vmatpush1.msra.mxu0 0.0
        %1930 = vmatprep.subr.mxu0 0.0
        %1931 = vmatpush1.msra.mxu0 0.0
        %1932 = vmatprep.subr.mxu0 0.0
        %1933 = vmatpush1.msra.mxu0 0.0
        %1934 = vmatprep.subr.mxu0 0.0
        %1935 = vmatpush1.msra.mxu0 0.0
        %1936 = vmatprep.subr.mxu0 0.0
        %1937 = vmatpush1.msra.mxu0 0.0
        %1938 = vmatprep.subr.mxu0 0.0
        %1939 = vmatpush1.msra.mxu0 0.0
        %1940 = vmatprep.subr.mxu0 0.0
        %1941 = vmatpush1.msra.mxu0 0.0
        %1942 = vmatprep.subr.mxu0 0.0
        %1943 = vmatpush1.msra.mxu0 0.0
        %1944 = vmatprep.subr.mxu0 0.0
        %1945 = vmatpush1.msra.mxu0 0.0
        %1946 = vmatprep.subr.mxu0 0.0
        %1947 = vmatpush1.msra.mxu0 0.0
        %1948 = vmatprep.subr.mxu0 0.0
        %1949 = vmatpush1.msra.mxu0 0.0
        %1950 = vmatprep.subr.mxu0 0.0
        %1951 = vmatpush1.msra.mxu0 0.0
        %1952 = vmatprep.subr.mxu0 0.0
        %1953 = vmatpush1.msra.mxu0 0.0
        %1954 = vmatprep.subr.mxu0 0.0
        %1955 = vmatpush1.msra.mxu0 0.0
        %1956 = vmatprep.subr.mxu0 0.0
        %1957 = vmatpush1.msra.mxu0 0.0
        %1958 = vmatprep.subr.mxu0 0.0
        %1959 = vmatpush1.msra.mxu0 0.0
        %1960 = vmatprep.subr.mxu0 0.0
        %1961 = vmatpush1.msra.mxu0 0.0
        %1962 = vmatprep.subr.mxu0 0.0
        %1963 = vmatpush1.msra.mxu0 0.0
        %1964 = vmatprep.subr.mxu0 0.0
        %1965 = vmatpush1.msra.mxu0 0.0
        %1966 = vmatprep.subr.mxu0 0.0
        %1967 = vmatpush1.msra.mxu0 0.0
        %1968 = vmatprep.mubr.f32.mxu0 0.0
        %1969 = vmatmul.mubr.f32.gmra.mrb[0].mxu0 %v1902
        %v1970 = vpop.f32.mrb[0].mxu0
        %v1971 = vadd.f32 0.0, %v1970
        %v1972 = vpop.f32.mrb[0].mxu0
        %1973 = vdwg.mxu0
        %v1975 = vsel %vm1050, %v1742, 0
        %1977 = vmatprep.subr.mxu0 0.0
        %1978 = vmatpush1.msra.mxu0 %v1027
        %1979 = vmatprep.subr.mxu0 0.0
        %1980 = vmatpush1.msra.mxu0 0.0
        %1981 = vmatprep.subr.mxu0 0.0
        %1982 = vmatpush1.msra.mxu0 0.0
        %1983 = vmatprep.subr.mxu0 0.0
        %1984 = vmatpush1.msra.mxu0 0.0
        %1985 = vmatprep.subr.mxu0 0.0
        %1986 = vmatpush1.msra.mxu0 0.0
        %1987 = vmatprep.subr.mxu0 0.0
        %1988 = vmatpush1.msra.mxu0 0.0
        %1989 = vmatprep.subr.mxu0 0.0
        %1990 = vmatpush1.msra.mxu0 0.0
        %1991 = vmatprep.subr.mxu0 0.0
        %1992 = vmatpush1.msra.mxu0 0.0
        %1993 = vmatprep.subr.mxu0 0.0
        %1994 = vmatpush1.msra.mxu0 0.0
        %1995 = vmatprep.subr.mxu0 0.0
        %1996 = vmatpush1.msra.mxu0 0.0
        %1997 = vmatprep.subr.mxu0 0.0
        %1998 = vmatpush1.msra.mxu0 0.0
        %1999 = vmatprep.subr.mxu0 0.0
        %2000 = vmatpush1.msra.mxu0 0.0
        %2001 = vmatprep.subr.mxu0 0.0
        %2002 = vmatpush1.msra.mxu0 0.0
        %2003 = vmatprep.subr.mxu0 0.0
        %2004 = vmatpush1.msra.mxu0 0.0
        %2005 = vmatprep.subr.mxu0 0.0
        %2006 = vmatpush1.msra.mxu0 0.0
        %2007 = vmatprep.subr.mxu0 0.0
        %2008 = vmatpush1.msra.mxu0 0.0
        %2009 = vmatprep.subr.mxu0 0.0
        %2010 = vmatpush1.msra.mxu0 0.0
        %2011 = vmatprep.subr.mxu0 0.0
        %2012 = vmatpush1.msra.mxu0 0.0
        %2013 = vmatprep.subr.mxu0 0.0
        %2014 = vmatpush1.msra.mxu0 0.0
        %2015 = vmatprep.subr.mxu0 0.0
        %2016 = vmatpush1.msra.mxu0 0.0
        %2017 = vmatprep.subr.mxu0 0.0
        %2018 = vmatpush1.msra.mxu0 0.0
        %2019 = vmatprep.subr.mxu0 0.0
        %2020 = vmatpush1.msra.mxu0 0.0
        %2021 = vmatprep.subr.mxu0 0.0
        %2022 = vmatpush1.msra.mxu0 0.0
        %2023 = vmatprep.subr.mxu0 0.0
        %2024 = vmatpush1.msra.mxu0 0.0
        %2025 = vmatprep.subr.mxu0 0.0
        %2026 = vmatpush1.msra.mxu0 0.0
        %2027 = vmatprep.subr.mxu0 0.0
        %2028 = vmatpush1.msra.mxu0 0.0
        %2029 = vmatprep.subr.mxu0 0.0
        %2030 = vmatpush1.msra.mxu0 0.0
        %2031 = vmatprep.subr.mxu0 0.0
        %2032 = vmatpush1.msra.mxu0 0.0
        %2033 = vmatprep.subr.mxu0 0.0
        %2034 = vmatpush1.msra.mxu0 0.0
        %2035 = vmatprep.subr.mxu0 0.0
        %2036 = vmatpush1.msra.mxu0 0.0
        %2037 = vmatprep.subr.mxu0 0.0
        %2038 = vmatpush1.msra.mxu0 0.0
        %2039 = vmatprep.subr.mxu0 0.0
        %2040 = vmatpush1.msra.mxu0 0.0
        %2041 = vmatprep.mubr.f32.mxu0 0.0
        %2042 = vmatmul.mubr.f32.gmra.mrb[0].mxu0 %v1975
        %v2043 = vpop.f32.mrb[0].mxu0
        %v2044 = vadd.f32 0.0, %v2043
        %v2045 = vpop.f32.mrb[0].mxu0
        %2046 = vdwg.mxu0
        %v2048 = vsel %vm1050, %v1743, 0
        %2050 = vmatprep.subr.mxu0 0.0
        %2051 = vmatpush1.msra.mxu0 %v1032
        %2052 = vmatprep.subr.mxu0 0.0
        %2053 = vmatpush1.msra.mxu0 0.0
        %2054 = vmatprep.subr.mxu0 0.0
        %2055 = vmatpush1.msra.mxu0 0.0
        %2056 = vmatprep.subr.mxu0 0.0
        %2057 = vmatpush1.msra.mxu0 0.0
        %2058 = vmatprep.subr.mxu0 0.0
        %2059 = vmatpush1.msra.mxu0 0.0
        %2060 = vmatprep.subr.mxu0 0.0
        %2061 = vmatpush1.msra.mxu0 0.0
        %2062 = vmatprep.subr.mxu0 0.0
        %2063 = vmatpush1.msra.mxu0 0.0
        %2064 = vmatprep.subr.mxu0 0.0
        %2065 = vmatpush1.msra.mxu0 0.0
        %2066 = vmatprep.subr.mxu0 0.0
        %2067 = vmatpush1.msra.mxu0 0.0
        %2068 = vmatprep.subr.mxu0 0.0
        %2069 = vmatpush1.msra.mxu0 0.0
        %2070 = vmatprep.subr.mxu0 0.0
        %2071 = vmatpush1.msra.mxu0 0.0
        %2072 = vmatprep.subr.mxu0 0.0
        %2073 = vmatpush1.msra.mxu0 0.0
        %2074 = vmatprep.subr.mxu0 0.0
        %2075 = vmatpush1.msra.mxu0 0.0
        %2076 = vmatprep.subr.mxu0 0.0
        %2077 = vmatpush1.msra.mxu0 0.0
        %2078 = vmatprep.subr.mxu0 0.0
        %2079 = vmatpush1.msra.mxu0 0.0
        %2080 = vmatprep.subr.mxu0 0.0
        %2081 = vmatpush1.msra.mxu0 0.0
        %2082 = vmatprep.subr.mxu0 0.0
        %2083 = vmatpush1.msra.mxu0 0.0
        %2084 = vmatprep.subr.mxu0 0.0
        %2085 = vmatpush1.msra.mxu0 0.0
        %2086 = vmatprep.subr.mxu0 0.0
        %2087 = vmatpush1.msra.mxu0 0.0
        %2088 = vmatprep.subr.mxu0 0.0
        %2089 = vmatpush1.msra.mxu0 0.0
        %2090 = vmatprep.subr.mxu0 0.0
        %2091 = vmatpush1.msra.mxu0 0.0
        %2092 = vmatprep.subr.mxu0 0.0
        %2093 = vmatpush1.msra.mxu0 0.0
        %2094 = vmatprep.subr.mxu0 0.0
        %2095 = vmatpush1.msra.mxu0 0.0
        %2096 = vmatprep.subr.mxu0 0.0
        %2097 = vmatpush1.msra.mxu0 0.0
        %2098 = vmatprep.subr.mxu0 0.0
        %2099 = vmatpush1.msra.mxu0 0.0
        %2100 = vmatprep.subr.mxu0 0.0
        %2101 = vmatpush1.msra.mxu0 0.0
        %2102 = vmatprep.subr.mxu0 0.0
        %2103 = vmatpush1.msra.mxu0 0.0
        %2104 = vmatprep.subr.mxu0 0.0
        %2105 = vmatpush1.msra.mxu0 0.0
        %2106 = vmatprep.subr.mxu0 0.0
        %2107 = vmatpush1.msra.mxu0 0.0
        %2108 = vmatprep.subr.mxu0 0.0
        %2109 = vmatpush1.msra.mxu0 0.0
        %2110 = vmatprep.subr.mxu0 0.0
        %2111 = vmatpush1.msra.mxu0 0.0
        %2112 = vmatprep.subr.mxu0 0.0
        %2113 = vmatpush1.msra.mxu0 0.0
        %2114 = vmatprep.mubr.f32.mxu0 0.0
        %2115 = vmatmul.mubr.f32.gmra.mrb[0].mxu0 %v2048
        %v2116 = vpop.f32.mrb[0].mxu0
        %v2117 = vadd.f32 0.0, %v2116
        %v2118 = vpop.f32.mrb[0].mxu0
        %2119 = vdwg.mxu0
        %v2121 = vsel %vm1050, %v1744, 0
        %2123 = vmatprep.subr.mxu0 0.0
        %2124 = vmatpush1.msra.mxu0 %v1037
        %2125 = vmatprep.subr.mxu0 0.0
        %2126 = vmatpush1.msra.mxu0 0.0
        %2127 = vmatprep.subr.mxu0 0.0
        %2128 = vmatpush1.msra.mxu0 0.0
        %2129 = vmatprep.subr.mxu0 0.0
        %2130 = vmatpush1.msra.mxu0 0.0
        %2131 = vmatprep.subr.mxu0 0.0
        %2132 = vmatpush1.msra.mxu0 0.0
        %2133 = vmatprep.subr.mxu0 0.0
        %2134 = vmatpush1.msra.mxu0 0.0
        %2135 = vmatprep.subr.mxu0 0.0
        %2136 = vmatpush1.msra.mxu0 0.0
        %2137 = vmatprep.subr.mxu0 0.0
        %2138 = vmatpush1.msra.mxu0 0.0
        %2139 = vmatprep.subr.mxu0 0.0
        %2140 = vmatpush1.msra.mxu0 0.0
        %2141 = vmatprep.subr.mxu0 0.0
        %2142 = vmatpush1.msra.mxu0 0.0
        %2143 = vmatprep.subr.mxu0 0.0
        %2144 = vmatpush1.msra.mxu0 0.0
        %2145 = vmatprep.subr.mxu0 0.0
        %2146 = vmatpush1.msra.mxu0 0.0
        %2147 = vmatprep.subr.mxu0 0.0
        %2148 = vmatpush1.msra.mxu0 0.0
        %2149 = vmatprep.subr.mxu0 0.0
        %2150 = vmatpush1.msra.mxu0 0.0
        %2151 = vmatprep.subr.mxu0 0.0
        %2152 = vmatpush1.msra.mxu0 0.0
        %2153 = vmatprep.subr.mxu0 0.0
        %2154 = vmatpush1.msra.mxu0 0.0
        %2155 = vmatprep.subr.mxu0 0.0
        %2156 = vmatpush1.msra.mxu0 0.0
        %2157 = vmatprep.subr.mxu0 0.0
        %2158 = vmatpush1.msra.mxu0 0.0
        %2159 = vmatprep.subr.mxu0 0.0
        %2160 = vmatpush1.msra.mxu0 0.0
        %2161 = vmatprep.subr.mxu0 0.0
        %2162 = vmatpush1.msra.mxu0 0.0
        %2163 = vmatprep.subr.mxu0 0.0
        %2164 = vmatpush1.msra.mxu0 0.0
        %2165 = vmatprep.subr.mxu0 0.0
        %2166 = vmatpush1.msra.mxu0 0.0
        %2167 = vmatprep.subr.mxu0 0.0
        %2168 = vmatpush1.msra.mxu0 0.0
        %2169 = vmatprep.subr.mxu0 0.0
        %2170 = vmatpush1.msra.mxu0 0.0
        %2171 = vmatprep.subr.mxu0 0.0
        %2172 = vmatpush1.msra.mxu0 0.0
        %2173 = vmatprep.subr.mxu0 0.0
        %2174 = vmatpush1.msra.mxu0 0.0
        %2175 = vmatprep.subr.mxu0 0.0
        %2176 = vmatpush1.msra.mxu0 0.0
        %2177 = vmatprep.subr.mxu0 0.0
        %2178 = vmatpush1.msra.mxu0 0.0
        %2179 = vmatprep.subr.mxu0 0.0
        %2180 = vmatpush1.msra.mxu0 0.0
        %2181 = vmatprep.subr.mxu0 0.0
        %2182 = vmatpush1.msra.mxu0 0.0
        %2183 = vmatprep.subr.mxu0 0.0
        %2184 = vmatpush1.msra.mxu0 0.0
        %2185 = vmatprep.subr.mxu0 0.0
        %2186 = vmatpush1.msra.mxu0 0.0
        %2187 = vmatprep.mubr.f32.mxu0 0.0
        %2188 = vmatmul.mubr.f32.gmra.mrb[0].mxu0 %v2121
        %v2189 = vpop.f32.mrb[0].mxu0
        %v2190 = vadd.f32 0.0, %v2189
        %v2191 = vpop.f32.mrb[0].mxu0
        %2192 = vdwg.mxu0
        %v2194 = vsel %vm1050, %v1745, 0
        %2196 = vmatprep.subr.mxu0 0.0
        %2197 = vmatpush1.msra.mxu0 %v1042
        %2198 = vmatprep.subr.mxu0 0.0
        %2199 = vmatpush1.msra.mxu0 0.0
        %2200 = vmatprep.subr.mxu0 0.0
        %2201 = vmatpush1.msra.mxu0 0.0
        %2202 = vmatprep.subr.mxu0 0.0
        %2203 = vmatpush1.msra.mxu0 0.0
        %2204 = vmatprep.subr.mxu0 0.0
        %2205 = vmatpush1.msra.mxu0 0.0
        %2206 = vmatprep.subr.mxu0 0.0
        %2207 = vmatpush1.msra.mxu0 0.0
        %2208 = vmatprep.subr.mxu0 0.0
        %2209 = vmatpush1.msra.mxu0 0.0
        %2210 = vmatprep.subr.mxu0 0.0
        %2211 = vmatpush1.msra.mxu0 0.0
        %2212 = vmatprep.subr.mxu0 0.0
        %2213 = vmatpush1.msra.mxu0 0.0
        %2214 = vmatprep.subr.mxu0 0.0
        %2215 = vmatpush1.msra.mxu0 0.0
        %2216 = vmatprep.subr.mxu0 0.0
        %2217 = vmatpush1.msra.mxu0 0.0
        %2218 = vmatprep.subr.mxu0 0.0
        %2219 = vmatpush1.msra.mxu0 0.0
        %2220 = vmatprep.subr.mxu0 0.0
        %2221 = vmatpush1.msra.mxu0 0.0
        %2222 = vmatprep.subr.mxu0 0.0
        %2223 = vmatpush1.msra.mxu0 0.0
        %2224 = vmatprep.subr.mxu0 0.0
        %2225 = vmatpush1.msra.mxu0 0.0
        %2226 = vmatprep.subr.mxu0 0.0
        %2227 = vmatpush1.msra.mxu0 0.0
        %2228 = vmatprep.subr.mxu0 0.0
        %2229 = vmatpush1.msra.mxu0 0.0
        %2230 = vmatprep.subr.mxu0 0.0
        %2231 = vmatpush1.msra.mxu0 0.0
        %2232 = vmatprep.subr.mxu0 0.0
        %2233 = vmatpush1.msra.mxu0 0.0
        %2234 = vmatprep.subr.mxu0 0.0
        %2235 = vmatpush1.msra.mxu0 0.0
        %2236 = vmatprep.subr.mxu0 0.0
        %2237 = vmatpush1.msra.mxu0 0.0
        %2238 = vmatprep.subr.mxu0 0.0
        %2239 = vmatpush1.msra.mxu0 0.0
        %2240 = vmatprep.subr.mxu0 0.0
        %2241 = vmatpush1.msra.mxu0 0.0
        %2242 = vmatprep.subr.mxu0 0.0
        %2243 = vmatpush1.msra.mxu0 0.0
        %2244 = vmatprep.subr.mxu0 0.0
        %2245 = vmatpush1.msra.mxu0 0.0
        %2246 = vmatprep.subr.mxu0 0.0
        %2247 = vmatpush1.msra.mxu0 0.0
        %2248 = vmatprep.subr.mxu0 0.0
        %2249 = vmatpush1.msra.mxu0 0.0
        %2250 = vmatprep.subr.mxu0 0.0
        %2251 = vmatpush1.msra.mxu0 0.0
        %2252 = vmatprep.subr.mxu0 0.0
        %2253 = vmatpush1.msra.mxu0 0.0
        %2254 = vmatprep.subr.mxu0 0.0
        %2255 = vmatpush1.msra.mxu0 0.0
        %2256 = vmatprep.subr.mxu0 0.0
        %2257 = vmatpush1.msra.mxu0 0.0
        %2258 = vmatprep.subr.mxu0 0.0
        %2259 = vmatpush1.msra.mxu0 0.0
        %2260 = vmatprep.mubr.f32.mxu0 0.0
        %2261 = vmatmul.mubr.f32.gmra.mrb[0].mxu0 %v2194
        %v2262 = vpop.f32.mrb[0].mxu0
        %v2263 = vadd.f32 0.0, %v2262
        %v2264 = vpop.f32.mrb[0].mxu0
        %2265 = vdwg.mxu0
        %v2267 = vsel %vm1050, %v1746, 0
        %2269 = vmatprep.subr.mxu0 0.0
        %2270 = vmatpush1.msra.mxu0 %v1047
        %2271 = vmatprep.subr.mxu0 0.0
        %2272 = vmatpush1.msra.mxu0 0.0
        %2273 = vmatprep.subr.mxu0 0.0
        %2274 = vmatpush1.msra.mxu0 0.0
        %2275 = vmatprep.subr.mxu0 0.0
        %2276 = vmatpush1.msra.mxu0 0.0
        %2277 = vmatprep.subr.mxu0 0.0
        %2278 = vmatpush1.msra.mxu0 0.0
        %2279 = vmatprep.subr.mxu0 0.0
        %2280 = vmatpush1.msra.mxu0 0.0
        %2281 = vmatprep.subr.mxu0 0.0
        %2282 = vmatpush1.msra.mxu0 0.0
        %2283 = vmatprep.subr.mxu0 0.0
        %2284 = vmatpush1.msra.mxu0 0.0
        %2285 = vmatprep.subr.mxu0 0.0
        %2286 = vmatpush1.msra.mxu0 0.0
        %2287 = vmatprep.subr.mxu0 0.0
        %2288 = vmatpush1.msra.mxu0 0.0
        %2289 = vmatprep.subr.mxu0 0.0
        %2290 = vmatpush1.msra.mxu0 0.0
        %2291 = vmatprep.subr.mxu0 0.0
        %2292 = vmatpush1.msra.mxu0 0.0
        %2293 = vmatprep.subr.mxu0 0.0
        %2294 = vmatpush1.msra.mxu0 0.0
        %2295 = vmatprep.subr.mxu0 0.0
        %2296 = vmatpush1.msra.mxu0 0.0
        %2297 = vmatprep.subr.mxu0 0.0
        %2298 = vmatpush1.msra.mxu0 0.0
        %2299 = vmatprep.subr.mxu0 0.0
        %2300 = vmatpush1.msra.mxu0 0.0
        %2301 = vmatprep.subr.mxu0 0.0
        %2302 = vmatpush1.msra.mxu0 0.0
        %2303 = vmatprep.subr.mxu0 0.0
        %2304 = vmatpush1.msra.mxu0 0.0
        %2305 = vmatprep.subr.mxu0 0.0
        %2306 = vmatpush1.msra.mxu0 0.0
        %2307 = vmatprep.subr.mxu0 0.0
        %2308 = vmatpush1.msra.mxu0 0.0
        %2309 = vmatprep.subr.mxu0 0.0
        %2310 = vmatpush1.msra.mxu0 0.0
        %2311 = vmatprep.subr.mxu0 0.0
        %2312 = vmatpush1.msra.mxu0 0.0
        %2313 = vmatprep.subr.mxu0 0.0
        %2314 = vmatpush1.msra.mxu0 0.0
        %2315 = vmatprep.subr.mxu0 0.0
        %2316 = vmatpush1.msra.mxu0 0.0
        %2317 = vmatprep.subr.mxu0 0.0
        %2318 = vmatpush1.msra.mxu0 0.0
        %2319 = vmatprep.subr.mxu0 0.0
        %2320 = vmatpush1.msra.mxu0 0.0
        %2321 = vmatprep.subr.mxu0 0.0
        %2322 = vmatpush1.msra.mxu0 0.0
        %2323 = vmatprep.subr.mxu0 0.0
        %2324 = vmatpush1.msra.mxu0 0.0
        %2325 = vmatprep.subr.mxu0 0.0
        %2326 = vmatpush1.msra.mxu0 0.0
        %2327 = vmatprep.subr.mxu0 0.0
        %2328 = vmatpush1.msra.mxu0 0.0
        %2329 = vmatprep.subr.mxu0 0.0
        %2330 = vmatpush1.msra.mxu0 0.0
        %2331 = vmatprep.subr.mxu0 0.0
        %2332 = vmatpush1.msra.mxu0 0.0
        %2333 = vmatprep.mubr.f32.mxu0 0.0
        %2334 = vmatmul.mubr.f32.gmra.mrb[0].mxu0 %v2267
        %v2335 = vpop.f32.mrb[0].mxu0
        %v2336 = vadd.f32 0.0, %v2335
        %v2337 = vpop.f32.mrb[0].mxu0
        %2338 = vdwg.mxu0
        %v2339 = vld [vmem:[%s594] sm:$0xff]
        %v2341 = vsel %vm1050, %v1825, 0
        %v2344 = vsel %vm1050, %v1898, 0
        %v2347 = vsel %vm1050, %v1971, 0
        %v2350 = vsel %vm1050, %v2044, 0
        %v2353 = vsel %vm1050, %v2117, 0
        %v2356 = vsel %vm1050, %v2190, 0
        %v2359 = vsel %vm1050, %v2263, 0
        %v2362 = vsel %vm1050, %v2336, 0
        %2364 = vmatprep.subr.mxu0 0.0
        %2365 = vmatpush1.msra.mxu0 %v2339
        %2366 = vmatprep.subr.mxu0 0.0
        %2367 = vmatpush1.msra.mxu0 0.0
        %2368 = vmatprep.subr.mxu0 0.0
        %2369 = vmatpush1.msra.mxu0 0.0
        %2370 = vmatprep.subr.mxu0 0.0
        %2371 = vmatpush1.msra.mxu0 0.0
        %2372 = vmatprep.subr.mxu0 0.0
        %2373 = vmatpush1.msra.mxu0 0.0
        %2374 = vmatprep.subr.mxu0 0.0
        %2375 = vmatpush1.msra.mxu0 0.0
        %2376 = vmatprep.subr.mxu0 0.0
        %2377 = vmatpush1.msra.mxu0 0.0
        %2378 = vmatprep.subr.mxu0 0.0
        %2379 = vmatpush1.msra.mxu0 0.0
        %2380 = vmatprep.subr.mxu0 0.0
        %2381 = vmatpush1.msra.mxu0 0.0
        %2382 = vmatprep.subr.mxu0 0.0
        %2383 = vmatpush1.msra.mxu0 0.0
        %2384 = vmatprep.subr.mxu0 0.0
        %2385 = vmatpush1.msra.mxu0 0.0
        %2386 = vmatprep.subr.mxu0 0.0
        %2387 = vmatpush1.msra.mxu0 0.0
        %2388 = vmatprep.subr.mxu0 0.0
        %2389 = vmatpush1.msra.mxu0 0.0
        %2390 = vmatprep.subr.mxu0 0.0
        %2391 = vmatpush1.msra.mxu0 0.0
        %2392 = vmatprep.subr.mxu0 0.0
        %2393 = vmatpush1.msra.mxu0 0.0
        %2394 = vmatprep.subr.mxu0 0.0
        %2395 = vmatpush1.msra.mxu0 0.0
        %2396 = vmatprep.subr.mxu0 0.0
        %2397 = vmatpush1.msra.mxu0 0.0
        %2398 = vmatprep.subr.mxu0 0.0
        %2399 = vmatpush1.msra.mxu0 0.0
        %2400 = vmatprep.subr.mxu0 0.0
        %2401 = vmatpush1.msra.mxu0 0.0
        %2402 = vmatprep.subr.mxu0 0.0
        %2403 = vmatpush1.msra.mxu0 0.0
        %2404 = vmatprep.subr.mxu0 0.0
        %2405 = vmatpush1.msra.mxu0 0.0
        %2406 = vmatprep.subr.mxu0 0.0
        %2407 = vmatpush1.msra.mxu0 0.0
        %2408 = vmatprep.subr.mxu0 0.0
        %2409 = vmatpush1.msra.mxu0 0.0
        %2410 = vmatprep.subr.mxu0 0.0
        %2411 = vmatpush1.msra.mxu0 0.0
        %2412 = vmatprep.subr.mxu0 0.0
        %2413 = vmatpush1.msra.mxu0 0.0
        %2414 = vmatprep.subr.mxu0 0.0
        %2415 = vmatpush1.msra.mxu0 0.0
        %2416 = vmatprep.subr.mxu0 0.0
        %2417 = vmatpush1.msra.mxu0 0.0
        %2418 = vmatprep.subr.mxu0 0.0
        %2419 = vmatpush1.msra.mxu0 0.0
        %2420 = vmatprep.subr.mxu0 0.0
        %2421 = vmatpush1.msra.mxu0 0.0
        %2422 = vmatprep.subr.mxu0 0.0
        %2423 = vmatpush1.msra.mxu0 0.0
        %2424 = vmatprep.subr.mxu0 0.0
        %2425 = vmatpush1.msra.mxu0 0.0
        %2426 = vmatprep.subr.mxu0 0.0
        %2427 = vmatpush1.msra.mxu0 0.0
        %2428 = vmatprep.mubr.f32.mxu0 0.0
        %2429 = vmatmul.mubr.f32.gmra.mrb[0].mxu0 %v2341
        %v2430 = vpop.f32.mrb[0].mxu0
        %v2431 = vadd.f32 0.0, %v2430
        %v2432 = vpop.f32.mrb[0].mxu0
        %2433 = vmatprep.mubr.f32.mxu0 0.0
        %2434 = vmatmul.mubr.f32.gmra.mrb[0].mxu0 %v2344
        %v2435 = vpop.f32.mrb[0].mxu0
        %v2436 = vadd.f32 0.0, %v2435
        %v2437 = vpop.f32.mrb[0].mxu0
        %2438 = vmatprep.mubr.f32.mxu0 0.0
        %2439 = vmatmul.mubr.f32.gmra.mrb[0].mxu0 %v2347
        %v2440 = vpop.f32.mrb[0].mxu0
        %v2441 = vadd.f32 0.0, %v2440
        %v2442 = vpop.f32.mrb[0].mxu0
        %2443 = vmatprep.mubr.f32.mxu0 0.0
        %2444 = vmatmul.mubr.f32.gmra.mrb[0].mxu0 %v2350
        %v2445 = vpop.f32.mrb[0].mxu0
        %v2446 = vadd.f32 0.0, %v2445
        %v2447 = vpop.f32.mrb[0].mxu0
        %2448 = vmatprep.mubr.f32.mxu0 0.0
        %2449 = vmatmul.mubr.f32.gmra.mrb[0].mxu0 %v2353
        %v2450 = vpop.f32.mrb[0].mxu0
        %v2451 = vadd.f32 0.0, %v2450
        %v2452 = vpop.f32.mrb[0].mxu0
        %2453 = vmatprep.mubr.f32.mxu0 0.0
        %2454 = vmatmul.mubr.f32.gmra.mrb[0].mxu0 %v2356
        %v2455 = vpop.f32.mrb[0].mxu0
        %v2456 = vadd.f32 0.0, %v2455
        %v2457 = vpop.f32.mrb[0].mxu0
        %2458 = vmatprep.mubr.f32.mxu0 0.0
        %2459 = vmatmul.mubr.f32.gmra.mrb[0].mxu0 %v2359
        %v2460 = vpop.f32.mrb[0].mxu0
        %v2461 = vadd.f32 0.0, %v2460
        %v2462 = vpop.f32.mrb[0].mxu0
        %2463 = vmatprep.mubr.f32.mxu0 0.0
        %2464 = vmatmul.mubr.f32.gmra.mrb[0].mxu0 %v2362
        %v2465 = vpop.f32.mrb[0].mxu0
        %v2466 = vadd.f32 0.0, %v2465
        %v2467 = vpop.f32.mrb[0].mxu0
        %2468 = vdwg.mxu0
        %p2469 = scmp.eq.s32.totalorder %s33, 0
        // Predicated region
        $region65: #{tpu_custom_call.1} parent=63 // pred_check
          %p2470 = pneg %p2469
        $region66: #{tpu_custom_call.1} parent=63 // pred_check_branch
          %2472 = sbr.rel (%p2470) target = $region68
        $region67: #{tpu_custom_call.1} parent=63 // pred_region
          %v2473 = vld [vmem:[%s10] sm:$0x1]
          %v2475 = vlaneseq
          %v2476 = vshrl.u32 %v2475, 7
          %v2477 = vsub.s32 0, %v2476
          %v2478 = vrot.slane %v2473, %v2477
          %2480 = vst.msk [vmem:[#allocation2] sm:$0xff] %vm632, %v2478
          %2481 = vst.msk [vmem:[#allocation2 + $0x8] sm:$0xff] %vm632, %v2478
          %2482 = vst.msk [vmem:[#allocation2 + $0x10] sm:$0xff] %vm632, %v2478
          %2483 = vst.msk [vmem:[#allocation2 + $0x18] sm:$0xff] %vm632, %v2478
          %2484 = vst.msk [vmem:[#allocation2 + $0x20] sm:$0xff] %vm632, %v2478
          %2485 = vst.msk [vmem:[#allocation2 + $0x28] sm:$0xff] %vm632, %v2478
          %2486 = vst.msk [vmem:[#allocation2 + $0x30] sm:$0xff] %vm632, %v2478
          %2487 = vst.msk [vmem:[#allocation2 + $0x38] sm:$0xff] %vm632, %v2478
        $region68: #{tpu_custom_call.1} parent=63 // pred_fallthru
          _
        %v2488 = vld [vmem:[#allocation2] sm:$0xff]
        %v2489 = vld [vmem:[#allocation2 + $0x8] sm:$0xff]
        %v2490 = vld [vmem:[#allocation2 + $0x10] sm:$0xff]
        %v2491 = vld [vmem:[#allocation2 + $0x18] sm:$0xff]
        %v2492 = vld [vmem:[#allocation2 + $0x20] sm:$0xff]
        %v2493 = vld [vmem:[#allocation2 + $0x28] sm:$0xff]
        %v2494 = vld [vmem:[#allocation2 + $0x30] sm:$0xff]
        %v2495 = vld [vmem:[#allocation2 + $0x38] sm:$0xff]
        %v2496 = vadd.f32 %v2488, %v2431
        %v2497 = vadd.f32 %v2489, %v2436
        %v2498 = vadd.f32 %v2490, %v2441
        %v2499 = vadd.f32 %v2491, %v2446
        %v2500 = vadd.f32 %v2492, %v2451
        %v2501 = vadd.f32 %v2493, %v2456
        %v2502 = vadd.f32 %v2494, %v2461
        %v2503 = vadd.f32 %v2495, %v2466
        %2504 = vst.msk [vmem:[#allocation2] sm:$0xff] %vm632, %v2496
        %2505 = vst.msk [vmem:[#allocation2 + $0x8] sm:$0xff] %vm632, %v2497
        %2506 = vst.msk [vmem:[#allocation2 + $0x10] sm:$0xff] %vm632, %v2498
        %2507 = vst.msk [vmem:[#allocation2 + $0x18] sm:$0xff] %vm632, %v2499
        %2508 = vst.msk [vmem:[#allocation2 + $0x20] sm:$0xff] %vm632, %v2500
        %2509 = vst.msk [vmem:[#allocation2 + $0x28] sm:$0xff] %vm632, %v2501
        %2510 = vst.msk [vmem:[#allocation2 + $0x30] sm:$0xff] %vm632, %v2502
        %2511 = vst.msk [vmem:[#allocation2 + $0x38] sm:$0xff] %vm632, %v2503
        %s2512 = sand.u32 %s357, 1
        %s2513 = scalar_lea.sflag [#allocation5], %s2512
        %s2514 = sand.u32 %s357, 1
        %s2515 = smul.addr %s2514, 64
        %s2516 = scalar_lea.vmem [#allocation4], %s2515
        // Predicated region
        $region69: #{tpu_custom_call.1} parent=63 // pred_check
          %p2517 = pneg %p339
        $region70: #{tpu_custom_call.1} parent=63 // pred_check_branch
          %2519 = sbr.rel (%p2517) target = $region72
        $region71: #{tpu_custom_call.1} parent=63 // pred_region
          %s2520 = smul.u32 8, %s32
          %s2522 = ssub.s32 1024, 1024
          %2523 = vsyncadd [#allocation3], %s2522
          %s2524 = smul.addr %s2520, 128
          %s2525 = scalar_lea.hbm %s11, %s2524
          %s2526 = sshll.u32 [#allocation2], 4
          %s2527 = int_to_ptr.vmem [resolvable:$true] %s2526
          %2532 = dma.vmem_to_hbm [thread:$0]  %s2527, 1024, %s2525, [#allocation3], 128, 128, 8
        $region72: #{tpu_custom_call.1} parent=63 // pred_fallthru
          _
        // Predicated region
        $region73: #{tpu_custom_call.1} parent=63 // pred_check
          %p2533 = pneg %p367
        $region74: #{tpu_custom_call.1} parent=63 // pred_check_branch
          %2535 = sbr.rel (%p2533) target = $region76
        $region75: #{tpu_custom_call.1} parent=63 // pred_region
          %s2536 = smul.u32 8, %s32
          %s2538 = ssub.s32 1024, 1024
          %2539 = vsyncadd %s2513, %s2538
          %s2540 = smul.addr %s2536, 4
          %s2541 = sadd.s32 %s33, %s2540
          %s2542 = smul.addr %s2541, 128
          %s2543 = scalar_lea.hbm %s12, %s2542
          %s2544 = sshll.u32 %s2516, 4
          %s2545 = int_to_ptr.vmem [resolvable:$true] %s2544
          %2550 = dma.vmem_to_hbm [thread:$0]  %s2545, 1024, %s2543, %s2513, 128, 512, 8
        $region76: #{tpu_custom_call.1} parent=63 // pred_fallthru
          _
        // Predicated region
        $region77: #{tpu_custom_call.1} parent=63 // pred_check
          %p2551 = pneg %p339
        $region78: #{tpu_custom_call.1} parent=63 // pred_check_branch
          %2553 = sbr.rel (%p2551) target = $region80
        $region79: #{tpu_custom_call.1} parent=63 // pred_region
          %2554 = dma.done [#allocation3], 1024
        $region80: #{tpu_custom_call.1} parent=63 // pred_fallthru
          _
      $region64: #{tpu_custom_call.1} parent=5 // pred_fallthru
        _
      %p2555 = scmp.le.s32.totalorder 2, %s23
      // Predicated region
      $region81: #{tpu_custom_call.1} parent=5 // pred_check
        %p2556 = pneg %p2555
      $region82: #{tpu_custom_call.1} parent=5 // pred_check_branch
        %2558 = sbr.rel (%p2556) target = $region84
      $region83: #{tpu_custom_call.1} parent=5 // pred_region
        %s2559 = ssub.s32 %s23, 2
        // Predicated region
        $region85: #{tpu_custom_call.1} parent=83 // pred_check
          %p2560 = pneg %p373
        $region86: #{tpu_custom_call.1} parent=83 // pred_check_branch
          %2562 = sbr.rel (%p2560) target = $region88
        $region87: #{tpu_custom_call.1} parent=83 // pred_region
          %s2563 = sand.u32 %s358, 1
          %s2564 = scalar_lea.sflag [#allocation5], %s2563
          %s2565 = sand.u32 %s358, 1
          %s2566 = smul.addr %s2565, 64
          %s2567 = scalar_lea.vmem [#allocation4], %s2566
          %2568 = dma.done %s2564, 1024
        $region88: #{tpu_custom_call.1} parent=83 // pred_fallthru
          _
      $region84: #{tpu_custom_call.1} parent=5 // pred_fallthru
        _
    $region6: #{tpu_custom_call.1} parent=1 // loop_footer
      %s27 = sadd.s32 1, %s23
    $region7: #{tpu_custom_call.1} parent=1 // loop_footer_branch
      %22 = sbr.rel target = $region3
    $region8: #{tpu_custom_call.1} parent=1 // loop_exit
      _
    %2569 = vsyncpa [#allocation3], 1
    %s2570 = scalar_lea.sflag [#allocation3], 1
    %2571 = vsyncpa %s2570, 1
    %2572 = vsyncpa [#allocation5], 1
    %s2573 = scalar_lea.sflag [#allocation5], 1
    %2574 = vsyncpa %s2573, 1

</llo_original>
